<compile_context>
chip_gen: v7x
topology: tpu7x:2x2x1
jax: 0.10.0
libtpu: 0.0.40
codegen_flags: <defaults>
</compile_context>

<pallas_src>
import functools

import jax
import jax.numpy as jnp
from jax.experimental import pallas as pl
from jax.experimental.pallas import tpu as pltpu

# Layer sizes of mynet in gpnet2_1_4: 2 -> 90 (x11 hidden, Tanh) -> 1
LAYER_SIZES = [2] + [90] * 11 + [1]
NUM_LAYERS = len(LAYER_SIZES) - 1   # 12 Linear layers
FEAT_PAD = 96                       # 90 padded up to a multiple of 8 sublanes


def mlp_kernel(x_ref, w_ref, b_ref, o_ref):
    """Fused 12-layer MLP, activations in [features, batch] layout.

    x_ref: [2, T]         input tile, batch on the lane axis
    w_ref: [12, 96, 96]   zero-padded weights, torch [out, in] layout
    b_ref: [96, 12]       zero-padded biases, one column per layer
    o_ref: [1, T]         output tile (row 0 of the padded final activation)
    """
    x = x_ref[...].astype(jnp.float32)                      # [2, T]

    # Layer 0 (in_features = 2): VPU broadcast multiply-adds, no K=2 MXU matmul.
    w0 = w_ref[0]                                           # [96, 96]; cols >= 2 are zero
    h = w0[:, 0:1] * x[0:1, :] + w0[:, 1:2] * x[1:2, :] + b_ref[:, 0:1]
    h = jnp.tanh(h)                                         # [96, T]; padded rows stay 0

    # Hidden layers 1..10: 90x90 matmuls (zero-padded to 96x96) on the MXU.
    for l in range(1, NUM_LAYERS - 1):
        h = jnp.dot(w_ref[l], h, preferred_element_type=jnp.float32) + b_ref[:, l:l + 1]
        h = jnp.tanh(h)

    # Final layer (90 -> 1): padded matmul; only row 0 of the result is real.
    l = NUM_LAYERS - 1
    h = jnp.dot(w_ref[l], h, preferred_element_type=jnp.float32) + b_ref[:, l:l + 1]
    o_ref[...] = h[0:1, :].astype(o_ref.dtype)


def pack_params(params):
    """params: list of (W [out, in], b [out]) in torch layout -> padded slabs."""
    w_slab = jnp.zeros((NUM_LAYERS, FEAT_PAD, FEAT_PAD), jnp.float32)
    b_slab = jnp.zeros((FEAT_PAD, NUM_LAYERS), jnp.float32)
    for l, (w, b) in enumerate(params):
        dout, din = w.shape
        w_slab = w_slab.at[l, :dout, :din].set(w.astype(jnp.float32))
        b_slab = b_slab.at[:dout, l].set(b.astype(jnp.float32))
    return w_slab, b_slab


@functools.partial(jax.jit, static_argnames=("tile_n",))
def gpnet2_1_4_forward(x, w_slab, b_slab, tile_n=256):
    """x: [N, 2] float32; returns mynet(x): [N, 1] float32."""
    N = x.shape[0]
    n_pad = ((N + tile_n - 1) // tile_n) * tile_n
    # Transposed, batch-on-lanes input; padded batch columns are zeros (discarded).
    xt = jnp.zeros((LAYER_SIZES[0], n_pad), jnp.float32).at[:, :N].set(
        x.astype(jnp.float32).T)

    out_t = pl.pallas_call(
        mlp_kernel,
        out_shape=jax.ShapeDtypeStruct((1, n_pad), jnp.float32),
        grid_spec=pltpu.PrefetchScalarGridSpec(
            num_scalar_prefetch=0,
            grid=(n_pad // tile_n,),
            in_specs=[
                pl.BlockSpec((LAYER_SIZES[0], tile_n), lambda i: (0, i)),
                pl.BlockSpec((NUM_LAYERS, FEAT_PAD, FEAT_PAD), lambda i: (0, 0, 0)),
                pl.BlockSpec((FEAT_PAD, NUM_LAYERS), lambda i: (0, 0)),
            ],
            out_specs=pl.BlockSpec((1, tile_n), lambda i: (0, i)),
        ),
        compiler_params=pltpu.CompilerParams(
            dimension_semantics=("parallel",)),
    )(xt, w_slab, b_slab)

    return out_t[0, :N][:, None]   # [N, 1], matches torch mynet(x_train)


def init_params(key):
    """Deterministic init mimicking torch.nn.Linear default (U[-1/sqrt(fan_in), +])."""
    params = []
    for l in range(NUM_LAYERS):
        din, dout = LAYER_SIZES[l], LAYER_SIZES[l + 1]
        key, kw, kb = jax.random.split(key, 3)
        bound = 1.0 / (din ** 0.5)
        w = jax.random.uniform(kw, (dout, din), jnp.float32, -bound, bound)  # torch [out, in]
        b = jax.random.uniform(kb, (dout,), jnp.float32, -bound, bound)
        params.append((w, b))
    return params


def reference_forward(x, params):
    h = x.astype(jnp.float32)
    for l, (w, b) in enumerate(params):
        h = jnp.dot(h, w.T, precision=jax.lax.Precision.HIGHEST) + b
        if l < NUM_LAYERS - 1:
            h = jnp.tanh(h)
    return h   # [N, 1]


if __name__ == "__main__":
    key = jax.random.PRNGKey(0)
    key, kx = jax.random.split(key)

    N = 512  # small batch of 2-D points; tile_n=256 -> 2-step "parallel" grid
    x = jax.random.normal(kx, (N, 2), jnp.float32)

    params = init_params(key)
    w_slab, b_slab = pack_params(params)

    out = gpnet2_1_4_forward(x, w_slab, b_slab, tile_n=256)
    out = jax.block_until_ready(out)

    ref = reference_forward(x, params)
    assert out.shape == (N, 1), out.shape
    max_err = float(jnp.max(jnp.abs(out - ref)))
    assert jnp.allclose(out, ref, atol=1e-3, rtol=1e-3), max_err

    # TODO(synk): gprh.GP_new (the y_train branch) is external code not provided;
    # only the neural-net branch `out = mynet(x_train)` is implemented.
    print("KERNEL_OK")
</pallas_src>

<mosaic_0001>
module attributes {stable_mosaic.version = 11 : i64} {
  func.func @mlp_kernel(%arg0: i32, %arg1: memref<2x256xf32, #tpu.memory_space<vmem>>, %arg2: memref<12x96x96xf32, #tpu.memory_space<vmem>>, %arg3: memref<96x12xf32, #tpu.memory_space<vmem>>, %arg4: memref<1x256xf32, #tpu.memory_space<vmem>>) attributes {dimension_semantics = [#tpu.dimension_semantics<parallel>], iteration_bounds = array<i64: 2>, scalar_prefetch = 0 : i64, scratch_operands = 0 : i64, tpu.core_type = #tpu.core_type<tc>, window_params = [{transform_indices = @transform_0, window_bounds = array<i64: 2, 256>}, {pipeline_mode = #tpu.pipeline_mode<synchronous>, transform_indices = @transform_1, window_bounds = array<i64: 12, 96, 96>}, {pipeline_mode = #tpu.pipeline_mode<synchronous>, transform_indices = @transform_2, window_bounds = array<i64: 96, 12>}, {transform_indices = @transform_3, window_bounds = array<i64: 1, 256>}]} {
    %c0 = arith.constant 0 : index
    %c0_0 = arith.constant 0 : index
    %0 = vector.load %arg1[%c0, %c0_0] : memref<2x256xf32, #tpu.memory_space<vmem>>, vector<2x256xf32>
    %c0_1 = arith.constant 0 : index
    %c0_2 = arith.constant 0 : index
    %c0_3 = arith.constant 0 : index
    %1 = vector.load %arg2[%c0_1, %c0_2, %c0_3] : memref<12x96x96xf32, #tpu.memory_space<vmem>>, vector<1x96x96xf32>
    %2 = vector.shape_cast %1 : vector<1x96x96xf32> to vector<96x96xf32>
    %3 = vector.extract_strided_slice %2 {offsets = [0, 0], sizes = [96, 1], strides = [1, 1]} : vector<96x96xf32> to vector<96x1xf32>
    %4 = vector.extract_strided_slice %0 {offsets = [0, 0], sizes = [1, 256], strides = [1, 1]} : vector<2x256xf32> to vector<1x256xf32>
    %5 = vector.broadcast %3 : vector<96x1xf32> to vector<96x256xf32>
    %6 = vector.broadcast %4 : vector<1x256xf32> to vector<96x256xf32>
    %7 = arith.mulf %5, %6 : vector<96x256xf32>
    %8 = vector.extract_strided_slice %2 {offsets = [0, 1], sizes = [96, 1], strides = [1, 1]} : vector<96x96xf32> to vector<96x1xf32>
    %9 = vector.extract_strided_slice %0 {offsets = [1, 0], sizes = [1, 256], strides = [1, 1]} : vector<2x256xf32> to vector<1x256xf32>
    %10 = vector.broadcast %8 : vector<96x1xf32> to vector<96x256xf32>
    %11 = vector.broadcast %9 : vector<1x256xf32> to vector<96x256xf32>
    %12 = arith.mulf %10, %11 : vector<96x256xf32>
    %13 = arith.addf %7, %12 : vector<96x256xf32>
    %c0_4 = arith.constant 0 : index
    %c0_5 = arith.constant 0 : index
    %14 = vector.load %arg3[%c0_4, %c0_5] : memref<96x12xf32, #tpu.memory_space<vmem>>, vector<96x1xf32>
    %15 = vector.broadcast %14 : vector<96x1xf32> to vector<96x256xf32>
    %16 = arith.addf %13, %15 : vector<96x256xf32>
    %17 = math.tanh %16 : vector<96x256xf32>
    %c1 = arith.constant 1 : index
    %c0_6 = arith.constant 0 : index
    %c0_7 = arith.constant 0 : index
    %18 = vector.load %arg2[%c1, %c0_6, %c0_7] : memref<12x96x96xf32, #tpu.memory_space<vmem>>, vector<1x96x96xf32>
    %19 = vector.shape_cast %18 : vector<1x96x96xf32> to vector<96x96xf32>
    %cst = arith.constant dense<0.000000e+00> : vector<96x256xf32>
    %20 = tpu.matmul %19, %17, %cst {dimension_numbers = #tpu.dot_dimension_numbers<[1], [0], [0], [1], [0, 0, 1, 1], [], []>} : vector<96x96xf32>, vector<96x256xf32>, vector<96x256xf32> -> vector<96x256xf32>
    %c0_8 = arith.constant 0 : index
    %c1_9 = arith.constant 1 : index
    %21 = vector.load %arg3[%c0_8, %c1_9] : memref<96x12xf32, #tpu.memory_space<vmem>>, vector<96x1xf32>
    %22 = vector.broadcast %21 : vector<96x1xf32> to vector<96x256xf32>
    %23 = arith.addf %20, %22 : vector<96x256xf32>
    %24 = math.tanh %23 : vector<96x256xf32>
    %c2 = arith.constant 2 : index
    %c0_10 = arith.constant 0 : index
    %c0_11 = arith.constant 0 : index
    %25 = vector.load %arg2[%c2, %c0_10, %c0_11] : memref<12x96x96xf32, #tpu.memory_space<vmem>>, vector<1x96x96xf32>
    %26 = vector.shape_cast %25 : vector<1x96x96xf32> to vector<96x96xf32>
    %cst_12 = arith.constant dense<0.000000e+00> : vector<96x256xf32>
    %27 = tpu.matmul %26, %24, %cst_12 {dimension_numbers = #tpu.dot_dimension_numbers<[1], [0], [0], [1], [0, 0, 1, 1], [], []>} : vector<96x96xf32>, vector<96x256xf32>, vector<96x256xf32> -> vector<96x256xf32>
    %c0_13 = arith.constant 0 : index
    %c2_14 = arith.constant 2 : index
    %28 = vector.load %arg3[%c0_13, %c2_14] : memref<96x12xf32, #tpu.memory_space<vmem>>, vector<96x1xf32>
    %29 = vector.broadcast %28 : vector<96x1xf32> to vector<96x256xf32>
    %30 = arith.addf %27, %29 : vector<96x256xf32>
    %31 = math.tanh %30 : vector<96x256xf32>
    %c3 = arith.constant 3 : index
    %c0_15 = arith.constant 0 : index
    %c0_16 = arith.constant 0 : index
    %32 = vector.load %arg2[%c3, %c0_15, %c0_16] : memref<12x96x96xf32, #tpu.memory_space<vmem>>, vector<1x96x96xf32>
    %33 = vector.shape_cast %32 : vector<1x96x96xf32> to vector<96x96xf32>
    %cst_17 = arith.constant dense<0.000000e+00> : vector<96x256xf32>
    %34 = tpu.matmul %33, %31, %cst_17 {dimension_numbers = #tpu.dot_dimension_numbers<[1], [0], [0], [1], [0, 0, 1, 1], [], []>} : vector<96x96xf32>, vector<96x256xf32>, vector<96x256xf32> -> vector<96x256xf32>
    %c0_18 = arith.constant 0 : index
    %c3_19 = arith.constant 3 : index
    %35 = vector.load %arg3[%c0_18, %c3_19] : memref<96x12xf32, #tpu.memory_space<vmem>>, vector<96x1xf32>
    %36 = vector.broadcast %35 : vector<96x1xf32> to vector<96x256xf32>
    %37 = arith.addf %34, %36 : vector<96x256xf32>
    %38 = math.tanh %37 : vector<96x256xf32>
    %c4 = arith.constant 4 : index
    %c0_20 = arith.constant 0 : index
    %c0_21 = arith.constant 0 : index
    %39 = vector.load %arg2[%c4, %c0_20, %c0_21] : memref<12x96x96xf32, #tpu.memory_space<vmem>>, vector<1x96x96xf32>
    %40 = vector.shape_cast %39 : vector<1x96x96xf32> to vector<96x96xf32>
    %cst_22 = arith.constant dense<0.000000e+00> : vector<96x256xf32>
    %41 = tpu.matmul %40, %38, %cst_22 {dimension_numbers = #tpu.dot_dimension_numbers<[1], [0], [0], [1], [0, 0, 1, 1], [], []>} : vector<96x96xf32>, vector<96x256xf32>, vector<96x256xf32> -> vector<96x256xf32>
    %c0_23 = arith.constant 0 : index
    %c4_24 = arith.constant 4 : index
    %42 = vector.load %arg3[%c0_23, %c4_24] : memref<96x12xf32, #tpu.memory_space<vmem>>, vector<96x1xf32>
    %43 = vector.broadcast %42 : vector<96x1xf32> to vector<96x256xf32>
    %44 = arith.addf %41, %43 : vector<96x256xf32>
    %45 = math.tanh %44 : vector<96x256xf32>
    %c5 = arith.constant 5 : index
    %c0_25 = arith.constant 0 : index
    %c0_26 = arith.constant 0 : index
    %46 = vector.load %arg2[%c5, %c0_25, %c0_26] : memref<12x96x96xf32, #tpu.memory_space<vmem>>, vector<1x96x96xf32>
    %47 = vector.shape_cast %46 : vector<1x96x96xf32> to vector<96x96xf32>
    %cst_27 = arith.constant dense<0.000000e+00> : vector<96x256xf32>
    %48 = tpu.matmul %47, %45, %cst_27 {dimension_numbers = #tpu.dot_dimension_numbers<[1], [0], [0], [1], [0, 0, 1, 1], [], []>} : vector<96x96xf32>, vector<96x256xf32>, vector<96x256xf32> -> vector<96x256xf32>
    %c0_28 = arith.constant 0 : index
    %c5_29 = arith.constant 5 : index
    %49 = vector.load %arg3[%c0_28, %c5_29] : memref<96x12xf32, #tpu.memory_space<vmem>>, vector<96x1xf32>
    %50 = vector.broadcast %49 : vector<96x1xf32> to vector<96x256xf32>
    %51 = arith.addf %48, %50 : vector<96x256xf32>
    %52 = math.tanh %51 : vector<96x256xf32>
    %c6 = arith.constant 6 : index
    %c0_30 = arith.constant 0 : index
    %c0_31 = arith.constant 0 : index
    %53 = vector.load %arg2[%c6, %c0_30, %c0_31] : memref<12x96x96xf32, #tpu.memory_space<vmem>>, vector<1x96x96xf32>
    %54 = vector.shape_cast %53 : vector<1x96x96xf32> to vector<96x96xf32>
    %cst_32 = arith.constant dense<0.000000e+00> : vector<96x256xf32>
    %55 = tpu.matmul %54, %52, %cst_32 {dimension_numbers = #tpu.dot_dimension_numbers<[1], [0], [0], [1], [0, 0, 1, 1], [], []>} : vector<96x96xf32>, vector<96x256xf32>, vector<96x256xf32> -> vector<96x256xf32>
    %c0_33 = arith.constant 0 : index
    %c6_34 = arith.constant 6 : index
    %56 = vector.load %arg3[%c0_33, %c6_34] : memref<96x12xf32, #tpu.memory_space<vmem>>, vector<96x1xf32>
    %57 = vector.broadcast %56 : vector<96x1xf32> to vector<96x256xf32>
    %58 = arith.addf %55, %57 : vector<96x256xf32>
    %59 = math.tanh %58 : vector<96x256xf32>
    %c7 = arith.constant 7 : index
    %c0_35 = arith.constant 0 : index
    %c0_36 = arith.constant 0 : index
    %60 = vector.load %arg2[%c7, %c0_35, %c0_36] : memref<12x96x96xf32, #tpu.memory_space<vmem>>, vector<1x96x96xf32>
    %61 = vector.shape_cast %60 : vector<1x96x96xf32> to vector<96x96xf32>
    %cst_37 = arith.constant dense<0.000000e+00> : vector<96x256xf32>
    %62 = tpu.matmul %61, %59, %cst_37 {dimension_numbers = #tpu.dot_dimension_numbers<[1], [0], [0], [1], [0, 0, 1, 1], [], []>} : vector<96x96xf32>, vector<96x256xf32>, vector<96x256xf32> -> vector<96x256xf32>
    %c0_38 = arith.constant 0 : index
    %c7_39 = arith.constant 7 : index
    %63 = vector.load %arg3[%c0_38, %c7_39] : memref<96x12xf32, #tpu.memory_space<vmem>>, vector<96x1xf32>
    %64 = vector.broadcast %63 : vector<96x1xf32> to vector<96x256xf32>
    %65 = arith.addf %62, %64 : vector<96x256xf32>
    %66 = math.tanh %65 : vector<96x256xf32>
    %c8 = arith.constant 8 : index
    %c0_40 = arith.constant 0 : index
    %c0_41 = arith.constant 0 : index
    %67 = vector.load %arg2[%c8, %c0_40, %c0_41] : memref<12x96x96xf32, #tpu.memory_space<vmem>>, vector<1x96x96xf32>
    %68 = vector.shape_cast %67 : vector<1x96x96xf32> to vector<96x96xf32>
    %cst_42 = arith.constant dense<0.000000e+00> : vector<96x256xf32>
    %69 = tpu.matmul %68, %66, %cst_42 {dimension_numbers = #tpu.dot_dimension_numbers<[1], [0], [0], [1], [0, 0, 1, 1], [], []>} : vector<96x96xf32>, vector<96x256xf32>, vector<96x256xf32> -> vector<96x256xf32>
    %c0_43 = arith.constant 0 : index
    %c8_44 = arith.constant 8 : index
    %70 = vector.load %arg3[%c0_43, %c8_44] : memref<96x12xf32, #tpu.memory_space<vmem>>, vector<96x1xf32>
    %71 = vector.broadcast %70 : vector<96x1xf32> to vector<96x256xf32>
    %72 = arith.addf %69, %71 : vector<96x256xf32>
    %73 = math.tanh %72 : vector<96x256xf32>
    %c9 = arith.constant 9 : index
    %c0_45 = arith.constant 0 : index
    %c0_46 = arith.constant 0 : index
    %74 = vector.load %arg2[%c9, %c0_45, %c0_46] : memref<12x96x96xf32, #tpu.memory_space<vmem>>, vector<1x96x96xf32>
    %75 = vector.shape_cast %74 : vector<1x96x96xf32> to vector<96x96xf32>
    %cst_47 = arith.constant dense<0.000000e+00> : vector<96x256xf32>
    %76 = tpu.matmul %75, %73, %cst_47 {dimension_numbers = #tpu.dot_dimension_numbers<[1], [0], [0], [1], [0, 0, 1, 1], [], []>} : vector<96x96xf32>, vector<96x256xf32>, vector<96x256xf32> -> vector<96x256xf32>
    %c0_48 = arith.constant 0 : index
    %c9_49 = arith.constant 9 : index
    %77 = vector.load %arg3[%c0_48, %c9_49] : memref<96x12xf32, #tpu.memory_space<vmem>>, vector<96x1xf32>
    %78 = vector.broadcast %77 : vector<96x1xf32> to vector<96x256xf32>
    %79 = arith.addf %76, %78 : vector<96x256xf32>
    %80 = math.tanh %79 : vector<96x256xf32>
    %c10 = arith.constant 10 : index
    %c0_50 = arith.constant 0 : index
    %c0_51 = arith.constant 0 : index
    %81 = vector.load %arg2[%c10, %c0_50, %c0_51] : memref<12x96x96xf32, #tpu.memory_space<vmem>>, vector<1x96x96xf32>
    %82 = vector.shape_cast %81 : vector<1x96x96xf32> to vector<96x96xf32>
    %cst_52 = arith.constant dense<0.000000e+00> : vector<96x256xf32>
    %83 = tpu.matmul %82, %80, %cst_52 {dimension_numbers = #tpu.dot_dimension_numbers<[1], [0], [0], [1], [0, 0, 1, 1], [], []>} : vector<96x96xf32>, vector<96x256xf32>, vector<96x256xf32> -> vector<96x256xf32>
    %c0_53 = arith.constant 0 : index
    %c10_54 = arith.constant 10 : index
    %84 = vector.load %arg3[%c0_53, %c10_54] : memref<96x12xf32, #tpu.memory_space<vmem>>, vector<96x1xf32>
    %85 = vector.broadcast %84 : vector<96x1xf32> to vector<96x256xf32>
    %86 = arith.addf %83, %85 : vector<96x256xf32>
    %87 = math.tanh %86 : vector<96x256xf32>
    %c11 = arith.constant 11 : index
    %c0_55 = arith.constant 0 : index
    %c0_56 = arith.constant 0 : index
    %88 = vector.load %arg2[%c11, %c0_55, %c0_56] : memref<12x96x96xf32, #tpu.memory_space<vmem>>, vector<1x96x96xf32>
    %89 = vector.shape_cast %88 : vector<1x96x96xf32> to vector<96x96xf32>
    %cst_57 = arith.constant dense<0.000000e+00> : vector<96x256xf32>
    %90 = tpu.matmul %89, %87, %cst_57 {dimension_numbers = #tpu.dot_dimension_numbers<[1], [0], [0], [1], [0, 0, 1, 1], [], []>} : vector<96x96xf32>, vector<96x256xf32>, vector<96x256xf32> -> vector<96x256xf32>
    %c0_58 = arith.constant 0 : index
    %c11_59 = arith.constant 11 : index
    %91 = vector.load %arg3[%c0_58, %c11_59] : memref<96x12xf32, #tpu.memory_space<vmem>>, vector<96x1xf32>
    %92 = vector.broadcast %91 : vector<96x1xf32> to vector<96x256xf32>
    %93 = arith.addf %90, %92 : vector<96x256xf32>
    %94 = vector.extract_strided_slice %93 {offsets = [0, 0], sizes = [1, 256], strides = [1, 1]} : vector<96x256xf32> to vector<1x256xf32>
    %c0_60 = arith.constant 0 : index
    %c0_61 = arith.constant 0 : index
    %95 = vector.load %arg4[%c0_60, %c0_61] : memref<1x256xf32, #tpu.memory_space<vmem>>, vector<1x256xf32>
    tpu.vector_store %arg4[%c0_60, %c0_61], %94 {strides = array<i32>} : memref<1x256xf32, #tpu.memory_space<vmem>>, vector<1x256xf32>,
    return
  }
  func.func @transform_0(%arg0: i32) -> (i32, i32) {
    %c0_i32 = arith.constant 0 : i32
    %c0_i32_0 = arith.constant 0 : i32
    return %c0_i32, %arg0 : i32, i32
  }
  func.func @transform_1(%arg0: i32) -> (i32, i32, i32) {
    %c0_i32 = arith.constant 0 : i32
    %c0_i32_0 = arith.constant 0 : i32
    %c0_i32_1 = arith.constant 0 : i32
    %c0_i32_2 = arith.constant 0 : i32
    return %c0_i32, %c0_i32_0, %c0_i32_1 : i32, i32, i32
  }
  func.func @transform_2(%arg0: i32) -> (i32, i32) {
    %c0_i32 = arith.constant 0 : i32
    %c0_i32_0 = arith.constant 0 : i32
    %c0_i32_1 = arith.constant 0 : i32
    return %c0_i32, %c0_i32_0 : i32, i32
  }
  func.func @transform_3(%arg0: i32) -> (i32, i32) {
    %c0_i32 = arith.constant 0 : i32
    %c0_i32_0 = arith.constant 0 : i32
    return %c0_i32, %arg0 : i32, i32
  }
}

</mosaic_0001>

<llo_original>
// kernel: gpnet2_1_4_forward.1
$region0: #{gpnet2_1_4_forward.1}
  #allocation0 [shape = 'u32[]', space=smem, size = 0x4, offset = 0x4, fixed_abs, tag = 'smem constant byte address 0x4 - core index']
  #allocation1 [shape = 'u32[144,128]{1,0:T(1,128)}', space=vmem, size = 0x12000, scoped, tag = 'internal scratch']
  %s0 = inlined_call_operand.vmem [shape: f32[2,512], index: 0, kind: input, shape index: {}]
  %s1 = inlined_call_operand.hbm [shape: f32[12,96,96], index: 1, kind: input, shape index: {}]
  %s2 = inlined_call_operand.vmem [shape: f32[96,12], index: 2, kind: input, shape index: {}]
  %s3 = inlined_call_operand.hbm [shape: f32[1,512], index: 3, kind: output, shape index: {}]
  %s4 = sld [smem:[#allocation0]]
  $region49: #{gpnet2_1_4_forward.1} parent=0
    _
  %s6 = ssub.s32 1, %s4
  %s7 = scalar_select 0, %s6, %s4
  $region1: #{gpnet2_1_4_forward.1} parent=0
    #allocation2 [shape = 'u8[589824]{0}', space=vmem, size = 0x90000, scoped, tag = 'input window, operand 1, single buffered']
    #allocation3 [shape = 's32[2]{0}', space=sflag, size = 0x8, scoped, tag = 'scoped memory for gpnet2_1_4_forward.1']
    #allocation4 [shape = 's32[2]{0}', space=sflag, size = 0x8, scoped, tag = 'scoped memory for gpnet2_1_4_forward.1']
    #allocation5 [shape = 'u8[2048]{0}', space=vmem, size = 0x800, scoped, tag = 'output window, operand 0']
    %8 = vsyncpa [#allocation3], 0
    %9 = vsyncpa [#allocation4], 0
    %s10 = scalar_lea.sflag [#allocation4], 1
    %11 = vsyncpa %s10, 0
    loop: start=0, step=1, limit=4
    $region2: #{gpnet2_1_4_forward.1} parent=1 // loop_pre_header
      _
    $region3: #{gpnet2_1_4_forward.1} parent=1 // loop_header
      %s13 = sphi 0, %s17
      %p14 = scmp.ge.s32.totalorder %s13, 4
      %s23 = sphi 0, %s25
      %s26 = sphi 0, %s23
      %s27 = sphi 0, %s26
      %s43 = sphi 0, %s27
      %s47 = sphi 0, %s47
      %s49 = sphi 0, %s47
      %s50 = sphi 0, %s49
      %s64 = sphi 0, %s50
      %s68 = sphi 0, %s68
      %s70 = sphi 0, %s68
      %s71 = sphi 0, %s70
      %s85 = sphi 0, %s71
      %s91 = sphi 0, %s93
      %s94 = sphi 0, %s91
      %s95 = sphi 0, %s94
      %s111 = sphi 0, %s95
    $region4: #{gpnet2_1_4_forward.1} parent=1 // loop_header_branch
      %16 = sbr.rel (%p14) target = $region8
    $region5: #{gpnet2_1_4_forward.1} parent=1 // loop_body
      %s18 = ssub.s32 %s13, 1
      %s19 = ssub.s32 %s13, 2
      %s20 = sadd.s32 %s13, 1
      %s21 = ssub.s32 %s13, %s20
      %p22 = scmp.eq.s32.totalorder %s21, 0
      %s24 = sadd.s32 %s23, 1
      %s25 = scalar_select %p22, %s23, %s24
      %p28 = pneg %p22
      %p29 = scmp.eq.s32.totalorder %s13, 1
      %p30 = por %p28, %p29
      %p31 = scmp.ne.s32.totalorder %s23, %s26
      %p32 = scmp.eq.s32.totalorder %s13, 0
      %p33 = por %p31, %p32
      %p34 = scmp.ne.s32.totalorder %s23, %s26
      %p35 = scmp.eq.s32.totalorder %s18, 1
      %p36 = por %p34, %p35
      %p37 = scmp.ne.s32.totalorder %s26, %s27
      %p38 = scmp.eq.s32.totalorder %s18, 0
      %p39 = por %p37, %p38
      %p40 = scmp.ne.s32.totalorder %s26, %s27
      %p41 = scmp.eq.s32.totalorder %s19, 1
      %p42 = por %p40, %p41
      %p44 = scmp.ne.s32.totalorder %s27, %s43
      %p45 = scmp.eq.s32.totalorder %s19, 0
      %p46 = por %p44, %p45
      %s48 = sadd.s32 %s47, 1
      %p51 = scmp.eq.s32.totalorder %s13, 1
      %p52 = scmp.ne.s32.totalorder %s47, %s49
      %p53 = scmp.eq.s32.totalorder %s13, 0
      %p54 = por %p52, %p53
      %p55 = scmp.ne.s32.totalorder %s47, %s49
      %p56 = scmp.eq.s32.totalorder %s18, 1
      %p57 = por %p55, %p56
      %p58 = scmp.ne.s32.totalorder %s49, %s50
      %p59 = scmp.eq.s32.totalorder %s18, 0
      %p60 = por %p58, %p59
      %p61 = scmp.ne.s32.totalorder %s49, %s50
      %p62 = scmp.eq.s32.totalorder %s19, 1
      %p63 = por %p61, %p62
      %p65 = scmp.ne.s32.totalorder %s50, %s64
      %p66 = scmp.eq.s32.totalorder %s19, 0
      %p67 = por %p65, %p66
      %s69 = sadd.s32 %s68, 1
      %p72 = scmp.eq.s32.totalorder %s13, 1
      %p73 = scmp.ne.s32.totalorder %s68, %s70
      %p74 = scmp.eq.s32.totalorder %s13, 0
      %p75 = por %p73, %p74
      %p76 = scmp.ne.s32.totalorder %s68, %s70
      %p77 = scmp.eq.s32.totalorder %s18, 1
      %p78 = por %p76, %p77
      %p79 = scmp.ne.s32.totalorder %s70, %s71
      %p80 = scmp.eq.s32.totalorder %s18, 0
      %p81 = por %p79, %p80
      %p82 = scmp.ne.s32.totalorder %s70, %s71
      %p83 = scmp.eq.s32.totalorder %s19, 1
      %p84 = por %p82, %p83
      %p86 = scmp.ne.s32.totalorder %s71, %s85
      %p87 = scmp.eq.s32.totalorder %s19, 0
      %p88 = por %p86, %p87
      %s89 = ssub.s32 %s13, %s20
      %p90 = scmp.eq.s32.totalorder %s89, 0
      %s92 = sadd.s32 %s91, 1
      %s93 = scalar_select %p90, %s91, %s92
      %p96 = pneg %p90
      %p97 = scmp.eq.s32.totalorder %s13, 1
      %p98 = por %p96, %p97
      %p99 = scmp.ne.s32.totalorder %s91, %s94
      %p100 = scmp.eq.s32.totalorder %s13, 0
      %p101 = por %p99, %p100
      %p102 = scmp.ne.s32.totalorder %s91, %s94
      %p103 = scmp.eq.s32.totalorder %s18, 1
      %p104 = por %p102, %p103
      %p105 = scmp.ne.s32.totalorder %s94, %s95
      %p106 = scmp.eq.s32.totalorder %s18, 0
      %p107 = por %p105, %p106
      %p108 = scmp.ne.s32.totalorder %s94, %s95
      %p109 = scmp.eq.s32.totalorder %s19, 1
      %p110 = por %p108, %p109
      %p112 = scmp.ne.s32.totalorder %s95, %s111
      %p113 = scmp.eq.s32.totalorder %s19, 0
      %p114 = por %p112, %p113
      %p115 = scmp.le.s32.totalorder 1, %s13
      %p116 = scmp.lt.s32.totalorder %s13, 3
      %p117 = pnand %p115, %p116
      %p118 = pneg %p117
      // Predicated region
      $region9: #{gpnet2_1_4_forward.1} parent=5 // pred_check
        _
      $region10: #{gpnet2_1_4_forward.1} parent=5 // pred_check_branch
        %120 = sbr.rel (%p117) target = $region12
      $region11: #{gpnet2_1_4_forward.1} parent=5 // pred_region
        %s121 = ssub.s32 %s13, 1
        // Predicated region
        $region13: #{gpnet2_1_4_forward.1} parent=11 // pred_check
          %p122 = pneg %p60
        $region14: #{gpnet2_1_4_forward.1} parent=11 // pred_check_branch
          %124 = sbr.rel (%p122) target = $region16
        $region15: #{gpnet2_1_4_forward.1} parent=11 // pred_region
          %s126 = ssub.s32 18432, 18432
          %127 = vsyncadd [#allocation3], %s126
          %s128 = sshll.u32 [#allocation2], 4
          %s129 = int_to_ptr.vmem [resolvable:$true] %s128
          %134 = dma.hbm_to_vmem [thread:$0]  %s1, 18432, %s129, [#allocation3], 128, 128, 8
        $region16: #{gpnet2_1_4_forward.1} parent=11 // pred_fallthru
          _
        // Predicated region
        $region17: #{gpnet2_1_4_forward.1} parent=11 // pred_check
          %p135 = pneg %p81
        $region18: #{gpnet2_1_4_forward.1} parent=11 // pred_check_branch
          %137 = sbr.rel (%p135) target = $region20
        $region19: #{gpnet2_1_4_forward.1} parent=11 // pred_region
          _
        $region20: #{gpnet2_1_4_forward.1} parent=11 // pred_fallthru
          _
      $region12: #{gpnet2_1_4_forward.1} parent=5 // pred_fallthru
        _
      %p138 = scmp.lt.s32.totalorder %s13, 2
      // Predicated region
      $region21: #{gpnet2_1_4_forward.1} parent=5 // pred_check
        %p139 = pneg %p138
      $region22: #{gpnet2_1_4_forward.1} parent=5 // pred_check_branch
        %141 = sbr.rel (%p139) target = $region24
      $region23: #{gpnet2_1_4_forward.1} parent=5 // pred_region
        // Predicated region
        $region25: #{gpnet2_1_4_forward.1} parent=23 // pred_check
          %p142 = pneg %p33
        $region26: #{gpnet2_1_4_forward.1} parent=23 // pred_check_branch
          %144 = sbr.rel (%p142) target = $region28
        $region27: #{gpnet2_1_4_forward.1} parent=23 // pred_region
          %s145 = smul.u32 2, %s13
          %p146 = scmp.lt.s32.totalorder %s145, 3
          %s147 = scalar_select %p146, %s145, 3
          %s148 = smul.addr %s147, 2
          %s149 = scalar_lea.vmem %s0, %s148
          %s150 = smul.u32 2, %s13
        $region28: #{gpnet2_1_4_forward.1} parent=23 // pred_fallthru
          _
      $region24: #{gpnet2_1_4_forward.1} parent=5 // pred_fallthru
        _
      %p151 = scmp.le.s32.totalorder 1, %s13
      %p152 = scmp.lt.s32.totalorder %s13, 3
      %p153 = pnand %p151, %p152
      %p154 = pneg %p153
      // Predicated region
      $region29: #{gpnet2_1_4_forward.1} parent=5 // pred_check
        _
      $region30: #{gpnet2_1_4_forward.1} parent=5 // pred_check_branch
        %156 = sbr.rel (%p153) target = $region32
      $region31: #{gpnet2_1_4_forward.1} parent=5 // pred_region
        %s157 = ssub.s32 %s13, 1
        // Predicated region
        $region33: #{gpnet2_1_4_forward.1} parent=31 // pred_check
          %p158 = pneg %p60
        $region34: #{gpnet2_1_4_forward.1} parent=31 // pred_check_branch
          %160 = sbr.rel (%p158) target = $region36
        $region35: #{gpnet2_1_4_forward.1} parent=31 // pred_region
          %161 = dma.done [#allocation3], 18432
        $region36: #{gpnet2_1_4_forward.1} parent=31 // pred_fallthru
          _
        %s162 = smul.u32 2, %s18
        %p163 = scmp.lt.s32.totalorder %s162, 3
        %s164 = scalar_select %p163, %s162, 3
        %s165 = smul.addr %s164, 2
        %s166 = scalar_lea.vmem %s0, %s165
        %p167 = pneg %p39
        %p168 = pneg %p36
        %p169 = pneg %p60
        %p170 = pneg %p57
        %p171 = pneg %p81
        %p172 = pneg %p78
        %p173 = pneg %p107
        %p174 = pneg %p104
        %s175 = sand.u32 %s94, 1
        %s176 = scalar_lea.sflag [#allocation4], %s175
        %s177 = sand.u32 %s94, 1
        %s178 = smul.addr %s177, 2
        %s179 = scalar_lea.vmem [#allocation5], %s178
        %s180 = smul.u32 2, %s18
        %p181 = scmp.lt.s32.totalorder %s180, 3
        %s182 = scalar_select %p181, %s180, 3
        %s183 = smul.addr %s182, 2
        %s184 = scalar_lea.vmem %s0, %s183
        %s185 = smul.u32 2, %s18
        %s186 = smul.u32 2, %s18
        %v187 = vld [vmem:[%s184] sm:$0xf]
        %v188 = vld [vmem:[#allocation2] sm:$0xff]
        %v189 = vld [vmem:[#allocation2 + $0x8] sm:$0xff]
        %v190 = vld [vmem:[#allocation2 + $0x10] sm:$0xff]
        %v191 = vld [vmem:[#allocation2 + $0x18] sm:$0xff]
        %v192 = vld [vmem:[#allocation2 + $0x20] sm:$0xff]
        %v193 = vld [vmem:[#allocation2 + $0x28] sm:$0xff]
        %v194 = vld [vmem:[#allocation2 + $0x30] sm:$0xff]
        %v195 = vld [vmem:[#allocation2 + $0x38] sm:$0xff]
        %v196 = vld [vmem:[#allocation2 + $0x40] sm:$0xff]
        %v197 = vld [vmem:[#allocation2 + $0x48] sm:$0xff]
        %v198 = vld [vmem:[#allocation2 + $0x50] sm:$0xff]
        %v199 = vld [vmem:[#allocation2 + $0x58] sm:$0xff]
        %201 = vset.pattern.permute.xlu0 0
        %202 = vperm.xlu0 %201, %v188
        %v203 = vpop.permute.xlu0 %202
        %206 = vset.pattern.permute.xlu0 0
        %207 = vperm.xlu0 %206, %v189
        %v208 = vpop.permute.xlu0 %207
        %211 = vset.pattern.permute.xlu0 0
        %212 = vperm.xlu0 %211, %v190
        %v213 = vpop.permute.xlu0 %212
        %216 = vset.pattern.permute.xlu0 0
        %217 = vperm.xlu0 %216, %v191
        %v218 = vpop.permute.xlu0 %217
        %221 = vset.pattern.permute.xlu0 0
        %222 = vperm.xlu0 %221, %v192
        %v223 = vpop.permute.xlu0 %222
        %226 = vset.pattern.permute.xlu0 0
        %227 = vperm.xlu0 %226, %v193
        %v228 = vpop.permute.xlu0 %227
        %231 = vset.pattern.permute.xlu0 0
        %232 = vperm.xlu0 %231, %v194
        %v233 = vpop.permute.xlu0 %232
        %236 = vset.pattern.permute.xlu0 0
        %237 = vperm.xlu0 %236, %v195
        %v238 = vpop.permute.xlu0 %237
        %241 = vset.pattern.permute.xlu0 0
        %242 = vperm.xlu0 %241, %v196
        %v243 = vpop.permute.xlu0 %242
        %246 = vset.pattern.permute.xlu0 0
        %247 = vperm.xlu0 %246, %v197
        %v248 = vpop.permute.xlu0 %247
        %251 = vset.pattern.permute.xlu0 0
        %252 = vperm.xlu0 %251, %v198
        %v253 = vpop.permute.xlu0 %252
        %256 = vset.pattern.permute.xlu0 0
        %257 = vperm.xlu0 %256, %v199
        %v258 = vpop.permute.xlu0 %257
        %v261 = vlaneseq
        %v262 = vshrl.u32 %v261, 7
        %v263 = vsub.s32 0, %v262
        %v264 = vrot.slane %v187, %v263
        %v265 = vlaneseq
        %v266 = vshrl.u32 %v265, 7
        %v267 = vsub.s32 2, %v266
        %v268 = vrot.slane %v187, %v267
        %v271 = vlaneseq
        %v272 = vshrl.u32 %v271, 7
        %v273 = vsub.s32 0, %v272
        %v274 = vrot.slane %v264, %v273
        %v275 = vlaneseq
        %v276 = vshrl.u32 %v275, 7
        %v277 = vsub.s32 0, %v276
        %v278 = vrot.slane %v268, %v277
        %v279 = vmul.f32 %v203, %v274
        %v280 = vmul.f32 %v203, %v278
        %v281 = vmul.f32 %v208, %v274
        %v282 = vmul.f32 %v208, %v278
        %v283 = vmul.f32 %v213, %v274
        %v284 = vmul.f32 %v213, %v278
        %v285 = vmul.f32 %v218, %v274
        %v286 = vmul.f32 %v218, %v278
        %v287 = vmul.f32 %v223, %v274
        %v288 = vmul.f32 %v223, %v278
        %v289 = vmul.f32 %v228, %v274
        %v290 = vmul.f32 %v228, %v278
        %v291 = vmul.f32 %v233, %v274
        %v292 = vmul.f32 %v233, %v278
        %v293 = vmul.f32 %v238, %v274
        %v294 = vmul.f32 %v238, %v278
        %v295 = vmul.f32 %v243, %v274
        %v296 = vmul.f32 %v243, %v278
        %v297 = vmul.f32 %v248, %v274
        %v298 = vmul.f32 %v248, %v278
        %v299 = vmul.f32 %v253, %v274
        %v300 = vmul.f32 %v253, %v278
        %v301 = vmul.f32 %v258, %v274
        %v302 = vmul.f32 %v258, %v278
        %303 = vset.pattern.permute.xlu0 1
        %304 = vperm.xlu0 %303, %v188
        %v305 = vpop.permute.xlu0 %304
        %307 = vset.pattern.permute.xlu0 1
        %308 = vperm.xlu0 %307, %v189
        %v309 = vpop.permute.xlu0 %308
        %311 = vset.pattern.permute.xlu0 1
        %312 = vperm.xlu0 %311, %v190
        %v313 = vpop.permute.xlu0 %312
        %315 = vset.pattern.permute.xlu0 1
        %316 = vperm.xlu0 %315, %v191
        %v317 = vpop.permute.xlu0 %316
        %319 = vset.pattern.permute.xlu0 1
        %320 = vperm.xlu0 %319, %v192
        %v321 = vpop.permute.xlu0 %320
        %323 = vset.pattern.permute.xlu0 1
        %324 = vperm.xlu0 %323, %v193
        %v325 = vpop.permute.xlu0 %324
        %327 = vset.pattern.permute.xlu0 1
        %328 = vperm.xlu0 %327, %v194
        %v329 = vpop.permute.xlu0 %328
        %331 = vset.pattern.permute.xlu0 1
        %332 = vperm.xlu0 %331, %v195
        %v333 = vpop.permute.xlu0 %332
        %335 = vset.pattern.permute.xlu0 1
        %336 = vperm.xlu0 %335, %v196
        %v337 = vpop.permute.xlu0 %336
        %339 = vset.pattern.permute.xlu0 1
        %340 = vperm.xlu0 %339, %v197
        %v341 = vpop.permute.xlu0 %340
        %343 = vset.pattern.permute.xlu0 1
        %344 = vperm.xlu0 %343, %v198
        %v345 = vpop.permute.xlu0 %344
        %347 = vset.pattern.permute.xlu0 1
        %348 = vperm.xlu0 %347, %v199
        %v349 = vpop.permute.xlu0 %348
        %v351 = vlaneseq
        %v352 = vshrl.u32 %v351, 7
        %v353 = vsub.s32 1, %v352
        %v354 = vrot.slane %v187, %v353
        %v355 = vlaneseq
        %v356 = vshrl.u32 %v355, 7
        %v357 = vsub.s32 3, %v356
        %v358 = vrot.slane %v187, %v357
        %v361 = vlaneseq
        %v362 = vshrl.u32 %v361, 7
        %v363 = vsub.s32 1, %v362
        %v364 = vrot.slane %v354, %v363
        %v365 = vlaneseq
        %v366 = vshrl.u32 %v365, 7
        %v367 = vsub.s32 1, %v366
        %v368 = vrot.slane %v358, %v367
        %v369 = vmul.f32 %v305, %v364
        %v370 = vmul.f32 %v305, %v368
        %v371 = vmul.f32 %v309, %v364
        %v372 = vmul.f32 %v309, %v368
        %v373 = vmul.f32 %v313, %v364
        %v374 = vmul.f32 %v313, %v368
        %v375 = vmul.f32 %v317, %v364
        %v376 = vmul.f32 %v317, %v368
        %v377 = vmul.f32 %v321, %v364
        %v378 = vmul.f32 %v321, %v368
        %v379 = vmul.f32 %v325, %v364
        %v380 = vmul.f32 %v325, %v368
        %v381 = vmul.f32 %v329, %v364
        %v382 = vmul.f32 %v329, %v368
        %v383 = vmul.f32 %v333, %v364
        %v384 = vmul.f32 %v333, %v368
        %v385 = vmul.f32 %v337, %v364
        %v386 = vmul.f32 %v337, %v368
        %v387 = vmul.f32 %v341, %v364
        %v388 = vmul.f32 %v341, %v368
        %v389 = vmul.f32 %v345, %v364
        %v390 = vmul.f32 %v345, %v368
        %v391 = vmul.f32 %v349, %v364
        %v392 = vmul.f32 %v349, %v368
        %v393 = vadd.f32 %v279, %v369
        %v394 = vadd.f32 %v280, %v370
        %v395 = vadd.f32 %v281, %v371
        %v396 = vadd.f32 %v282, %v372
        %v397 = vadd.f32 %v283, %v373
        %v398 = vadd.f32 %v284, %v374
        %v399 = vadd.f32 %v285, %v375
        %v400 = vadd.f32 %v286, %v376
        %v401 = vadd.f32 %v287, %v377
        %v402 = vadd.f32 %v288, %v378
        %v403 = vadd.f32 %v289, %v379
        %v404 = vadd.f32 %v290, %v380
        %v405 = vadd.f32 %v291, %v381
        %v406 = vadd.f32 %v292, %v382
        %v407 = vadd.f32 %v293, %v383
        %v408 = vadd.f32 %v294, %v384
        %v409 = vadd.f32 %v295, %v385
        %v410 = vadd.f32 %v296, %v386
        %v411 = vadd.f32 %v297, %v387
        %v412 = vadd.f32 %v298, %v388
        %v413 = vadd.f32 %v299, %v389
        %v414 = vadd.f32 %v300, %v390
        %v415 = vadd.f32 %v301, %v391
        %v416 = vadd.f32 %v302, %v392
        %v417 = vld [vmem:[%s2] sm:$0xff]
        %v418 = vld [vmem:[%s2 + $0x8] sm:$0xff]
        %v419 = vld [vmem:[%s2 + $0x10] sm:$0xff]
        %v420 = vld [vmem:[%s2 + $0x18] sm:$0xff]
        %v421 = vld [vmem:[%s2 + $0x20] sm:$0xff]
        %v422 = vld [vmem:[%s2 + $0x28] sm:$0xff]
        %v423 = vld [vmem:[%s2 + $0x30] sm:$0xff]
        %v424 = vld [vmem:[%s2 + $0x38] sm:$0xff]
        %v425 = vld [vmem:[%s2 + $0x40] sm:$0xff]
        %v426 = vld [vmem:[%s2 + $0x48] sm:$0xff]
        %v427 = vld [vmem:[%s2 + $0x50] sm:$0xff]
        %v428 = vld [vmem:[%s2 + $0x58] sm:$0xff]
        %430 = vset.pattern.permute.xlu0 0
        %431 = vperm.xlu0 %430, %v417
        %v432 = vpop.permute.xlu0 %431
        %435 = vset.pattern.permute.xlu0 0
        %436 = vperm.xlu0 %435, %v418
        %v437 = vpop.permute.xlu0 %436
        %440 = vset.pattern.permute.xlu0 0
        %441 = vperm.xlu0 %440, %v419
        %v442 = vpop.permute.xlu0 %441
        %445 = vset.pattern.permute.xlu0 0
        %446 = vperm.xlu0 %445, %v420
        %v447 = vpop.permute.xlu0 %446
        %450 = vset.pattern.permute.xlu0 0
        %451 = vperm.xlu0 %450, %v421
        %v452 = vpop.permute.xlu0 %451
        %455 = vset.pattern.permute.xlu0 0
        %456 = vperm.xlu0 %455, %v422
        %v457 = vpop.permute.xlu0 %456
        %460 = vset.pattern.permute.xlu0 0
        %461 = vperm.xlu0 %460, %v423
        %v462 = vpop.permute.xlu0 %461
        %465 = vset.pattern.permute.xlu0 0
        %466 = vperm.xlu0 %465, %v424
        %v467 = vpop.permute.xlu0 %466
        %470 = vset.pattern.permute.xlu0 0
        %471 = vperm.xlu0 %470, %v425
        %v472 = vpop.permute.xlu0 %471
        %475 = vset.pattern.permute.xlu0 0
        %476 = vperm.xlu0 %475, %v426
        %v477 = vpop.permute.xlu0 %476
        %480 = vset.pattern.permute.xlu0 0
        %481 = vperm.xlu0 %480, %v427
        %v482 = vpop.permute.xlu0 %481
        %485 = vset.pattern.permute.xlu0 0
        %486 = vperm.xlu0 %485, %v428
        %v487 = vpop.permute.xlu0 %486
        %v489 = vadd.f32 %v393, %v432
        %v490 = vadd.f32 %v394, %v432
        %v491 = vadd.f32 %v395, %v437
        %v492 = vadd.f32 %v396, %v437
        %v493 = vadd.f32 %v397, %v442
        %v494 = vadd.f32 %v398, %v442
        %v495 = vadd.f32 %v399, %v447
        %v496 = vadd.f32 %v400, %v447
        %v497 = vadd.f32 %v401, %v452
        %v498 = vadd.f32 %v402, %v452
        %v499 = vadd.f32 %v403, %v457
        %v500 = vadd.f32 %v404, %v457
        %v501 = vadd.f32 %v405, %v462
        %v502 = vadd.f32 %v406, %v462
        %v503 = vadd.f32 %v407, %v467
        %v504 = vadd.f32 %v408, %v467
        %v505 = vadd.f32 %v409, %v472
        %v506 = vadd.f32 %v410, %v472
        %v507 = vadd.f32 %v411, %v477
        %v508 = vadd.f32 %v412, %v477
        %v509 = vadd.f32 %v413, %v482
        %v510 = vadd.f32 %v414, %v482
        %v511 = vadd.f32 %v415, %v487
        %v512 = vadd.f32 %v416, %v487
        %v513 = vtanh.pop %v489
        %v514 = vtanh.pop %v490
        %v515 = vtanh.pop %v491
        %v516 = vtanh.pop %v492
        %v517 = vtanh.pop %v493
        %v518 = vtanh.pop %v494
        %v519 = vtanh.pop %v495
        %v520 = vtanh.pop %v496
        %v521 = vtanh.pop %v497
        %v522 = vtanh.pop %v498
        %v523 = vtanh.pop %v499
        %v524 = vtanh.pop %v500
        %v525 = vtanh.pop %v501
        %v526 = vtanh.pop %v502
        %v527 = vtanh.pop %v503
        %v528 = vtanh.pop %v504
        %v529 = vtanh.pop %v505
        %v530 = vtanh.pop %v506
        %v531 = vtanh.pop %v507
        %v532 = vtanh.pop %v508
        %v533 = vtanh.pop %v509
        %v534 = vtanh.pop %v510
        %v535 = vtanh.pop %v511
        %v536 = vtanh.pop %v512
        %s537 = scalar_lea.vmem [#allocation2], 96
        %v538 = vld [vmem:[%s537] sm:$0xff]
        %v539 = vld [vmem:[%s537 + $0x8] sm:$0xff]
        %v540 = vld [vmem:[%s537 + $0x10] sm:$0xff]
        %v541 = vld [vmem:[%s537 + $0x18] sm:$0xff]
        %v542 = vld [vmem:[%s537 + $0x20] sm:$0xff]
        %v543 = vld [vmem:[%s537 + $0x28] sm:$0xff]
        %v544 = vld [vmem:[%s537 + $0x30] sm:$0xff]
        %v545 = vld [vmem:[%s537 + $0x38] sm:$0xff]
        %v546 = vld [vmem:[%s537 + $0x40] sm:$0xff]
        %v547 = vld [vmem:[%s537 + $0x48] sm:$0xff]
        %v548 = vld [vmem:[%s537 + $0x50] sm:$0xff]
        %v549 = vld [vmem:[%s537 + $0x58] sm:$0xff]
        %550 = vset.pattern.permute.xlu0 1
        %551 = vperm.xlu0 %550, %v417
        %v552 = vpop.permute.xlu0 %551
        %554 = vset.pattern.permute.xlu0 1
        %555 = vperm.xlu0 %554, %v418
        %v556 = vpop.permute.xlu0 %555
        %558 = vset.pattern.permute.xlu0 1
        %559 = vperm.xlu0 %558, %v419
        %v560 = vpop.permute.xlu0 %559
        %562 = vset.pattern.permute.xlu0 1
        %563 = vperm.xlu0 %562, %v420
        %v564 = vpop.permute.xlu0 %563
        %566 = vset.pattern.permute.xlu0 1
        %567 = vperm.xlu0 %566, %v421
        %v568 = vpop.permute.xlu0 %567
        %570 = vset.pattern.permute.xlu0 1
        %571 = vperm.xlu0 %570, %v422
        %v572 = vpop.permute.xlu0 %571
        %574 = vset.pattern.permute.xlu0 1
        %575 = vperm.xlu0 %574, %v423
        %v576 = vpop.permute.xlu0 %575
        %578 = vset.pattern.permute.xlu0 1
        %579 = vperm.xlu0 %578, %v424
        %v580 = vpop.permute.xlu0 %579
        %582 = vset.pattern.permute.xlu0 1
        %583 = vperm.xlu0 %582, %v425
        %v584 = vpop.permute.xlu0 %583
        %586 = vset.pattern.permute.xlu0 1
        %587 = vperm.xlu0 %586, %v426
        %v588 = vpop.permute.xlu0 %587
        %590 = vset.pattern.permute.xlu0 1
        %591 = vperm.xlu0 %590, %v427
        %v592 = vpop.permute.xlu0 %591
        %594 = vset.pattern.permute.xlu0 1
        %595 = vperm.xlu0 %594, %v428
        %v596 = vpop.permute.xlu0 %595
        %vm598 = vcmask 785408
        %v600 = vsel %vm598, %v538, 0
        %v603 = vsel %vm598, %v539, 0
        %v606 = vsel %vm598, %v540, 0
        %v609 = vsel %vm598, %v541, 0
        %v612 = vsel %vm598, %v542, 0
        %v615 = vsel %vm598, %v543, 0
        %v618 = vsel %vm598, %v544, 0
        %v621 = vsel %vm598, %v545, 0
        %v624 = vsel %vm598, %v546, 0
        %v627 = vsel %vm598, %v547, 0
        %v630 = vsel %vm598, %v548, 0
        %v633 = vsel %vm598, %v549, 0
        %635 = vmatprep.subr.mxu0 %v514
        %636 = vmatpush1.msra.mxu0 %v513
        %637 = vmatprep.subr.mxu0 %v516
        %638 = vmatpush1.msra.mxu0 %v515
        %639 = vmatprep.subr.mxu0 %v518
        %640 = vmatpush1.msra.mxu0 %v517
        %641 = vmatprep.subr.mxu0 %v520
        %642 = vmatpush1.msra.mxu0 %v519
        %643 = vmatprep.subr.mxu0 %v522
        %644 = vmatpush1.msra.mxu0 %v521
        %645 = vmatprep.subr.mxu0 %v524
        %646 = vmatpush1.msra.mxu0 %v523
        %647 = vmatprep.subr.mxu0 %v526
        %648 = vmatpush1.msra.mxu0 %v525
        %649 = vmatprep.subr.mxu0 %v528
        %650 = vmatpush1.msra.mxu0 %v527
        %651 = vmatprep.subr.mxu0 %v530
        %652 = vmatpush1.msra.mxu0 %v529
        %653 = vmatprep.subr.mxu0 %v532
        %654 = vmatpush1.msra.mxu0 %v531
        %655 = vmatprep.subr.mxu0 %v534
        %656 = vmatpush1.msra.mxu0 %v533
        %657 = vmatprep.subr.mxu0 %v536
        %658 = vmatpush1.msra.mxu0 %v535
        %659 = vmatprep.subr.mxu0 0.0
        %660 = vmatpush1.msra.mxu0 0.0
        %661 = vmatprep.subr.mxu0 0.0
        %662 = vmatpush1.msra.mxu0 0.0
        %663 = vmatprep.subr.mxu0 0.0
        %664 = vmatpush1.msra.mxu0 0.0
        %665 = vmatprep.subr.mxu0 0.0
        %666 = vmatpush1.msra.mxu0 0.0
        %667 = vmatprep.subr.mxu0 0.0
        %668 = vmatpush1.msra.mxu0 0.0
        %669 = vmatprep.subr.mxu0 0.0
        %670 = vmatpush1.msra.mxu0 0.0
        %671 = vmatprep.subr.mxu0 0.0
        %672 = vmatpush1.msra.mxu0 0.0
        %673 = vmatprep.subr.mxu0 0.0
        %674 = vmatpush1.msra.mxu0 0.0
        %675 = vmatprep.subr.mxu0 0.0
        %676 = vmatpush1.msra.mxu0 0.0
        %677 = vmatprep.subr.mxu0 0.0
        %678 = vmatpush1.msra.mxu0 0.0
        %679 = vmatprep.subr.mxu0 0.0
        %680 = vmatpush1.msra.mxu0 0.0
        %681 = vmatprep.subr.mxu0 0.0
        %682 = vmatpush1.msra.mxu0 0.0
        %683 = vmatprep.subr.mxu0 0.0
        %684 = vmatpush1.msra.mxu0 0.0
        %685 = vmatprep.subr.mxu0 0.0
        %686 = vmatpush1.msra.mxu0 0.0
        %687 = vmatprep.subr.mxu0 0.0
        %688 = vmatpush1.msra.mxu0 0.0
        %689 = vmatprep.subr.mxu0 0.0
        %690 = vmatpush1.msra.mxu0 0.0
        %691 = vmatprep.subr.mxu0 0.0
        %692 = vmatpush1.msra.mxu0 0.0
        %693 = vmatprep.subr.mxu0 0.0
        %694 = vmatpush1.msra.mxu0 0.0
        %695 = vmatprep.subr.mxu0 0.0
        %696 = vmatpush1.msra.mxu0 0.0
        %697 = vmatprep.subr.mxu0 0.0
        %698 = vmatpush1.msra.mxu0 0.0
        %699 = vmatprep.mubr.f32.mxu0 0.0
        %700 = vmatmul.mubr.f32.gmra.mrb[0].mxu0 %v600
        %v701 = vpop.f32.mrb[0].mxu0
        %v702 = vadd.f32 %v552, %v701
        %v703 = vpop.f32.mrb[0].mxu0
        %v704 = vadd.f32 %v552, %v703
        %705 = vmatprep.mubr.f32.mxu0 0.0
        %706 = vmatmul.mubr.f32.gmra.mrb[0].mxu0 %v603
        %v707 = vpop.f32.mrb[0].mxu0
        %v708 = vadd.f32 %v556, %v707
        %v709 = vpop.f32.mrb[0].mxu0
        %v710 = vadd.f32 %v556, %v709
        %711 = vmatprep.mubr.f32.mxu0 0.0
        %712 = vmatmul.mubr.f32.gmra.mrb[0].mxu0 %v606
        %v713 = vpop.f32.mrb[0].mxu0
        %v714 = vadd.f32 %v560, %v713
        %v715 = vpop.f32.mrb[0].mxu0
        %v716 = vadd.f32 %v560, %v715
        %717 = vmatprep.mubr.f32.mxu0 0.0
        %718 = vmatmul.mubr.f32.gmra.mrb[0].mxu0 %v609
        %v719 = vpop.f32.mrb[0].mxu0
        %v720 = vadd.f32 %v564, %v719
        %v721 = vpop.f32.mrb[0].mxu0
        %v722 = vadd.f32 %v564, %v721
        %723 = vmatprep.mubr.f32.mxu0 0.0
        %724 = vmatmul.mubr.f32.gmra.mrb[0].mxu0 %v612
        %v725 = vpop.f32.mrb[0].mxu0
        %v726 = vadd.f32 %v568, %v725
        %v727 = vpop.f32.mrb[0].mxu0
        %v728 = vadd.f32 %v568, %v727
        %729 = vmatprep.mubr.f32.mxu0 0.0
        %730 = vmatmul.mubr.f32.gmra.mrb[0].mxu0 %v615
        %v731 = vpop.f32.mrb[0].mxu0
        %v732 = vadd.f32 %v572, %v731
        %v733 = vpop.f32.mrb[0].mxu0
        %v734 = vadd.f32 %v572, %v733
        %735 = vmatprep.mubr.f32.mxu0 0.0
        %736 = vmatmul.mubr.f32.gmra.mrb[0].mxu0 %v618
        %v737 = vpop.f32.mrb[0].mxu0
        %v738 = vadd.f32 %v576, %v737
        %v739 = vpop.f32.mrb[0].mxu0
        %v740 = vadd.f32 %v576, %v739
        %741 = vmatprep.mubr.f32.mxu0 0.0
        %742 = vmatmul.mubr.f32.gmra.mrb[0].mxu0 %v621
        %v743 = vpop.f32.mrb[0].mxu0
        %v744 = vadd.f32 %v580, %v743
        %v745 = vpop.f32.mrb[0].mxu0
        %v746 = vadd.f32 %v580, %v745
        %747 = vmatprep.mubr.f32.mxu0 0.0
        %748 = vmatmul.mubr.f32.gmra.mrb[0].mxu0 %v624
        %v749 = vpop.f32.mrb[0].mxu0
        %v750 = vadd.f32 %v584, %v749
        %v751 = vpop.f32.mrb[0].mxu0
        %v752 = vadd.f32 %v584, %v751
        %753 = vmatprep.mubr.f32.mxu0 0.0
        %754 = vmatmul.mubr.f32.gmra.mrb[0].mxu0 %v627
        %v755 = vpop.f32.mrb[0].mxu0
        %v756 = vadd.f32 %v588, %v755
        %v757 = vpop.f32.mrb[0].mxu0
        %v758 = vadd.f32 %v588, %v757
        %759 = vmatprep.mubr.f32.mxu0 0.0
        %760 = vmatmul.mubr.f32.gmra.mrb[0].mxu0 %v630
        %v761 = vpop.f32.mrb[0].mxu0
        %v762 = vadd.f32 %v592, %v761
        %v763 = vpop.f32.mrb[0].mxu0
        %v764 = vadd.f32 %v592, %v763
        %765 = vmatprep.mubr.f32.mxu0 0.0
        %766 = vmatmul.mubr.f32.gmra.mrb[0].mxu0 %v633
        %v767 = vpop.f32.mrb[0].mxu0
        %v768 = vadd.f32 %v596, %v767
        %v769 = vpop.f32.mrb[0].mxu0
        %v770 = vadd.f32 %v596, %v769
        %771 = vdwg.mxu0
        %v772 = vtanh.pop %v702
        %v773 = vtanh.pop %v704
        %v774 = vtanh.pop %v708
        %v775 = vtanh.pop %v710
        %v776 = vtanh.pop %v714
        %v777 = vtanh.pop %v716
        %v778 = vtanh.pop %v720
        %v779 = vtanh.pop %v722
        %v780 = vtanh.pop %v726
        %v781 = vtanh.pop %v728
        %v782 = vtanh.pop %v732
        %v783 = vtanh.pop %v734
        %v784 = vtanh.pop %v738
        %v785 = vtanh.pop %v740
        %v786 = vtanh.pop %v744
        %v787 = vtanh.pop %v746
        %v788 = vtanh.pop %v750
        %v789 = vtanh.pop %v752
        %v790 = vtanh.pop %v756
        %v791 = vtanh.pop %v758
        %v792 = vtanh.pop %v762
        %v793 = vtanh.pop %v764
        %v794 = vtanh.pop %v768
        %v795 = vtanh.pop %v770
        %s796 = scalar_lea.vmem [#allocation2], 192
        %v797 = vld [vmem:[%s796] sm:$0xff]
        %v798 = vld [vmem:[%s796 + $0x8] sm:$0xff]
        %v799 = vld [vmem:[%s796 + $0x10] sm:$0xff]
        %v800 = vld [vmem:[%s796 + $0x18] sm:$0xff]
        %v801 = vld [vmem:[%s796 + $0x20] sm:$0xff]
        %v802 = vld [vmem:[%s796 + $0x28] sm:$0xff]
        %v803 = vld [vmem:[%s796 + $0x30] sm:$0xff]
        %v804 = vld [vmem:[%s796 + $0x38] sm:$0xff]
        %v805 = vld [vmem:[%s796 + $0x40] sm:$0xff]
        %v806 = vld [vmem:[%s796 + $0x48] sm:$0xff]
        %v807 = vld [vmem:[%s796 + $0x50] sm:$0xff]
        %v808 = vld [vmem:[%s796 + $0x58] sm:$0xff]
        %809 = vset.pattern.permute.xlu0 2
        %810 = vperm.xlu0 %809, %v417
        %v811 = vpop.permute.xlu0 %810
        %813 = vset.pattern.permute.xlu0 2
        %814 = vperm.xlu0 %813, %v418
        %v815 = vpop.permute.xlu0 %814
        %817 = vset.pattern.permute.xlu0 2
        %818 = vperm.xlu0 %817, %v419
        %v819 = vpop.permute.xlu0 %818
        %821 = vset.pattern.permute.xlu0 2
        %822 = vperm.xlu0 %821, %v420
        %v823 = vpop.permute.xlu0 %822
        %825 = vset.pattern.permute.xlu0 2
        %826 = vperm.xlu0 %825, %v421
        %v827 = vpop.permute.xlu0 %826
        %829 = vset.pattern.permute.xlu0 2
        %830 = vperm.xlu0 %829, %v422
        %v831 = vpop.permute.xlu0 %830
        %833 = vset.pattern.permute.xlu0 2
        %834 = vperm.xlu0 %833, %v423
        %v835 = vpop.permute.xlu0 %834
        %837 = vset.pattern.permute.xlu0 2
        %838 = vperm.xlu0 %837, %v424
        %v839 = vpop.permute.xlu0 %838
        %841 = vset.pattern.permute.xlu0 2
        %842 = vperm.xlu0 %841, %v425
        %v843 = vpop.permute.xlu0 %842
        %845 = vset.pattern.permute.xlu0 2
        %846 = vperm.xlu0 %845, %v426
        %v847 = vpop.permute.xlu0 %846
        %849 = vset.pattern.permute.xlu0 2
        %850 = vperm.xlu0 %849, %v427
        %v851 = vpop.permute.xlu0 %850
        %853 = vset.pattern.permute.xlu0 2
        %854 = vperm.xlu0 %853, %v428
        %v855 = vpop.permute.xlu0 %854
        %v858 = vsel %vm598, %v797, 0
        %v861 = vsel %vm598, %v798, 0
        %v864 = vsel %vm598, %v799, 0
        %v867 = vsel %vm598, %v800, 0
        %v870 = vsel %vm598, %v801, 0
        %v873 = vsel %vm598, %v802, 0
        %v876 = vsel %vm598, %v803, 0
        %v879 = vsel %vm598, %v804, 0
        %v882 = vsel %vm598, %v805, 0
        %v885 = vsel %vm598, %v806, 0
        %v888 = vsel %vm598, %v807, 0
        %v891 = vsel %vm598, %v808, 0
        %893 = vmatprep.subr.mxu0 %v773
        %894 = vmatpush1.msra.mxu0 %v772
        %895 = vmatprep.subr.mxu0 %v775
        %896 = vmatpush1.msra.mxu0 %v774
        %897 = vmatprep.subr.mxu0 %v777
        %898 = vmatpush1.msra.mxu0 %v776
        %899 = vmatprep.subr.mxu0 %v779
        %900 = vmatpush1.msra.mxu0 %v778
        %901 = vmatprep.subr.mxu0 %v781
        %902 = vmatpush1.msra.mxu0 %v780
        %903 = vmatprep.subr.mxu0 %v783
        %904 = vmatpush1.msra.mxu0 %v782
        %905 = vmatprep.subr.mxu0 %v785
        %906 = vmatpush1.msra.mxu0 %v784
        %907 = vmatprep.subr.mxu0 %v787
        %908 = vmatpush1.msra.mxu0 %v786
        %909 = vmatprep.subr.mxu0 %v789
        %910 = vmatpush1.msra.mxu0 %v788
        %911 = vmatprep.subr.mxu0 %v791
        %912 = vmatpush1.msra.mxu0 %v790
        %913 = vmatprep.subr.mxu0 %v793
        %914 = vmatpush1.msra.mxu0 %v792
        %915 = vmatprep.subr.mxu0 %v795
        %916 = vmatpush1.msra.mxu0 %v794
        %917 = vmatprep.subr.mxu0 0.0
        %918 = vmatpush1.msra.mxu0 0.0
        %919 = vmatprep.subr.mxu0 0.0
        %920 = vmatpush1.msra.mxu0 0.0
        %921 = vmatprep.subr.mxu0 0.0
        %922 = vmatpush1.msra.mxu0 0.0
        %923 = vmatprep.subr.mxu0 0.0
        %924 = vmatpush1.msra.mxu0 0.0
        %925 = vmatprep.subr.mxu0 0.0
        %926 = vmatpush1.msra.mxu0 0.0
        %927 = vmatprep.subr.mxu0 0.0
        %928 = vmatpush1.msra.mxu0 0.0
        %929 = vmatprep.subr.mxu0 0.0
        %930 = vmatpush1.msra.mxu0 0.0
        %931 = vmatprep.subr.mxu0 0.0
        %932 = vmatpush1.msra.mxu0 0.0
        %933 = vmatprep.subr.mxu0 0.0
        %934 = vmatpush1.msra.mxu0 0.0
        %935 = vmatprep.subr.mxu0 0.0
        %936 = vmatpush1.msra.mxu0 0.0
        %937 = vmatprep.subr.mxu0 0.0
        %938 = vmatpush1.msra.mxu0 0.0
        %939 = vmatprep.subr.mxu0 0.0
        %940 = vmatpush1.msra.mxu0 0.0
        %941 = vmatprep.subr.mxu0 0.0
        %942 = vmatpush1.msra.mxu0 0.0
        %943 = vmatprep.subr.mxu0 0.0
        %944 = vmatpush1.msra.mxu0 0.0
        %945 = vmatprep.subr.mxu0 0.0
        %946 = vmatpush1.msra.mxu0 0.0
        %947 = vmatprep.subr.mxu0 0.0
        %948 = vmatpush1.msra.mxu0 0.0
        %949 = vmatprep.subr.mxu0 0.0
        %950 = vmatpush1.msra.mxu0 0.0
        %951 = vmatprep.subr.mxu0 0.0
        %952 = vmatpush1.msra.mxu0 0.0
        %953 = vmatprep.subr.mxu0 0.0
        %954 = vmatpush1.msra.mxu0 0.0
        %955 = vmatprep.subr.mxu0 0.0
        %956 = vmatpush1.msra.mxu0 0.0
        %957 = vmatprep.mubr.f32.mxu0 0.0
        %958 = vmatmul.mubr.f32.gmra.mrb[0].mxu0 %v858
        %v959 = vpop.f32.mrb[0].mxu0
        %v960 = vadd.f32 %v811, %v959
        %v961 = vpop.f32.mrb[0].mxu0
        %v962 = vadd.f32 %v811, %v961
        %963 = vmatprep.mubr.f32.mxu0 0.0
        %964 = vmatmul.mubr.f32.gmra.mrb[0].mxu0 %v861
        %v965 = vpop.f32.mrb[0].mxu0
        %v966 = vadd.f32 %v815, %v965
        %v967 = vpop.f32.mrb[0].mxu0
        %v968 = vadd.f32 %v815, %v967
        %969 = vmatprep.mubr.f32.mxu0 0.0
        %970 = vmatmul.mubr.f32.gmra.mrb[0].mxu0 %v864
        %v971 = vpop.f32.mrb[0].mxu0
        %v972 = vadd.f32 %v819, %v971
        %v973 = vpop.f32.mrb[0].mxu0
        %v974 = vadd.f32 %v819, %v973
        %975 = vmatprep.mubr.f32.mxu0 0.0
        %976 = vmatmul.mubr.f32.gmra.mrb[0].mxu0 %v867
        %v977 = vpop.f32.mrb[0].mxu0
        %v978 = vadd.f32 %v823, %v977
        %v979 = vpop.f32.mrb[0].mxu0
        %v980 = vadd.f32 %v823, %v979
        %981 = vmatprep.mubr.f32.mxu0 0.0
        %982 = vmatmul.mubr.f32.gmra.mrb[0].mxu0 %v870
        %v983 = vpop.f32.mrb[0].mxu0
        %v984 = vadd.f32 %v827, %v983
        %v985 = vpop.f32.mrb[0].mxu0
        %v986 = vadd.f32 %v827, %v985
        %987 = vmatprep.mubr.f32.mxu0 0.0
        %988 = vmatmul.mubr.f32.gmra.mrb[0].mxu0 %v873
        %v989 = vpop.f32.mrb[0].mxu0
        %v990 = vadd.f32 %v831, %v989
        %v991 = vpop.f32.mrb[0].mxu0
        %v992 = vadd.f32 %v831, %v991
        %993 = vmatprep.mubr.f32.mxu0 0.0
        %994 = vmatmul.mubr.f32.gmra.mrb[0].mxu0 %v876
        %v995 = vpop.f32.mrb[0].mxu0
        %v996 = vadd.f32 %v835, %v995
        %v997 = vpop.f32.mrb[0].mxu0
        %v998 = vadd.f32 %v835, %v997
        %999 = vmatprep.mubr.f32.mxu0 0.0
        %1000 = vmatmul.mubr.f32.gmra.mrb[0].mxu0 %v879
        %v1001 = vpop.f32.mrb[0].mxu0
        %v1002 = vadd.f32 %v839, %v1001
        %v1003 = vpop.f32.mrb[0].mxu0
        %v1004 = vadd.f32 %v839, %v1003
        %1005 = vmatprep.mubr.f32.mxu0 0.0
        %1006 = vmatmul.mubr.f32.gmra.mrb[0].mxu0 %v882
        %v1007 = vpop.f32.mrb[0].mxu0
        %v1008 = vadd.f32 %v843, %v1007
        %v1009 = vpop.f32.mrb[0].mxu0
        %v1010 = vadd.f32 %v843, %v1009
        %1011 = vmatprep.mubr.f32.mxu0 0.0
        %1012 = vmatmul.mubr.f32.gmra.mrb[0].mxu0 %v885
        %v1013 = vpop.f32.mrb[0].mxu0
        %v1014 = vadd.f32 %v847, %v1013
        %v1015 = vpop.f32.mrb[0].mxu0
        %v1016 = vadd.f32 %v847, %v1015
        %1017 = vmatprep.mubr.f32.mxu0 0.0
        %1018 = vmatmul.mubr.f32.gmra.mrb[0].mxu0 %v888
        %v1019 = vpop.f32.mrb[0].mxu0
        %v1020 = vadd.f32 %v851, %v1019
        %v1021 = vpop.f32.mrb[0].mxu0
        %v1022 = vadd.f32 %v851, %v1021
        %1023 = vmatprep.mubr.f32.mxu0 0.0
        %1024 = vmatmul.mubr.f32.gmra.mrb[0].mxu0 %v891
        %v1025 = vpop.f32.mrb[0].mxu0
        %v1026 = vadd.f32 %v855, %v1025
        %v1027 = vpop.f32.mrb[0].mxu0
        %v1028 = vadd.f32 %v855, %v1027
        %1029 = vdwg.mxu0
        %v1030 = vtanh.pop %v960
        %v1031 = vtanh.pop %v962
        %v1032 = vtanh.pop %v966
        %v1033 = vtanh.pop %v968
        %v1034 = vtanh.pop %v972
        %v1035 = vtanh.pop %v974
        %v1036 = vtanh.pop %v978
        %v1037 = vtanh.pop %v980
        %v1038 = vtanh.pop %v984
        %v1039 = vtanh.pop %v986
        %v1040 = vtanh.pop %v990
        %v1041 = vtanh.pop %v992
        %v1042 = vtanh.pop %v996
        %v1043 = vtanh.pop %v998
        %v1044 = vtanh.pop %v1002
        %v1045 = vtanh.pop %v1004
        %v1046 = vtanh.pop %v1008
        %v1047 = vtanh.pop %v1010
        %v1048 = vtanh.pop %v1014
        %v1049 = vtanh.pop %v1016
        %v1050 = vtanh.pop %v1020
        %v1051 = vtanh.pop %v1022
        %v1052 = vtanh.pop %v1026
        %v1053 = vtanh.pop %v1028
        %s1054 = scalar_lea.vmem [#allocation2], 288
        %v1055 = vld [vmem:[%s1054] sm:$0xff]
        %v1056 = vld [vmem:[%s1054 + $0x8] sm:$0xff]
        %v1057 = vld [vmem:[%s1054 + $0x10] sm:$0xff]
        %v1058 = vld [vmem:[%s1054 + $0x18] sm:$0xff]
        %v1059 = vld [vmem:[%s1054 + $0x20] sm:$0xff]
        %v1060 = vld [vmem:[%s1054 + $0x28] sm:$0xff]
        %v1061 = vld [vmem:[%s1054 + $0x30] sm:$0xff]
        %v1062 = vld [vmem:[%s1054 + $0x38] sm:$0xff]
        %v1063 = vld [vmem:[%s1054 + $0x40] sm:$0xff]
        %v1064 = vld [vmem:[%s1054 + $0x48] sm:$0xff]
        %v1065 = vld [vmem:[%s1054 + $0x50] sm:$0xff]
        %v1066 = vld [vmem:[%s1054 + $0x58] sm:$0xff]
        %1067 = vset.pattern.permute.xlu0 3
        %1068 = vperm.xlu0 %1067, %v417
        %v1069 = vpop.permute.xlu0 %1068
        %1071 = vset.pattern.permute.xlu0 3
        %1072 = vperm.xlu0 %1071, %v418
        %v1073 = vpop.permute.xlu0 %1072
        %1075 = vset.pattern.permute.xlu0 3
        %1076 = vperm.xlu0 %1075, %v419
        %v1077 = vpop.permute.xlu0 %1076
        %1079 = vset.pattern.permute.xlu0 3
        %1080 = vperm.xlu0 %1079, %v420
        %v1081 = vpop.permute.xlu0 %1080
        %1083 = vset.pattern.permute.xlu0 3
        %1084 = vperm.xlu0 %1083, %v421
        %v1085 = vpop.permute.xlu0 %1084
        %1087 = vset.pattern.permute.xlu0 3
        %1088 = vperm.xlu0 %1087, %v422
        %v1089 = vpop.permute.xlu0 %1088
        %1091 = vset.pattern.permute.xlu0 3
        %1092 = vperm.xlu0 %1091, %v423
        %v1093 = vpop.permute.xlu0 %1092
        %1095 = vset.pattern.permute.xlu0 3
        %1096 = vperm.xlu0 %1095, %v424
        %v1097 = vpop.permute.xlu0 %1096
        %1099 = vset.pattern.permute.xlu0 3
        %1100 = vperm.xlu0 %1099, %v425
        %v1101 = vpop.permute.xlu0 %1100
        %1103 = vset.pattern.permute.xlu0 3
        %1104 = vperm.xlu0 %1103, %v426
        %v1105 = vpop.permute.xlu0 %1104
        %1107 = vset.pattern.permute.xlu0 3
        %1108 = vperm.xlu0 %1107, %v427
        %v1109 = vpop.permute.xlu0 %1108
        %1111 = vset.pattern.permute.xlu0 3
        %1112 = vperm.xlu0 %1111, %v428
        %v1113 = vpop.permute.xlu0 %1112
        %v1116 = vsel %vm598, %v1055, 0
        %v1119 = vsel %vm598, %v1056, 0
        %v1122 = vsel %vm598, %v1057, 0
        %v1125 = vsel %vm598, %v1058, 0
        %v1128 = vsel %vm598, %v1059, 0
        %v1131 = vsel %vm598, %v1060, 0
        %v1134 = vsel %vm598, %v1061, 0
        %v1137 = vsel %vm598, %v1062, 0
        %v1140 = vsel %vm598, %v1063, 0
        %v1143 = vsel %vm598, %v1064, 0
        %v1146 = vsel %vm598, %v1065, 0
        %v1149 = vsel %vm598, %v1066, 0
        %1151 = vmatprep.subr.mxu0 %v1031
        %1152 = vmatpush1.msra.mxu0 %v1030
        %1153 = vmatprep.subr.mxu0 %v1033
        %1154 = vmatpush1.msra.mxu0 %v1032
        %1155 = vmatprep.subr.mxu0 %v1035
        %1156 = vmatpush1.msra.mxu0 %v1034
        %1157 = vmatprep.subr.mxu0 %v1037
        %1158 = vmatpush1.msra.mxu0 %v1036
        %1159 = vmatprep.subr.mxu0 %v1039
        %1160 = vmatpush1.msra.mxu0 %v1038
        %1161 = vmatprep.subr.mxu0 %v1041
        %1162 = vmatpush1.msra.mxu0 %v1040
        %1163 = vmatprep.subr.mxu0 %v1043
        %1164 = vmatpush1.msra.mxu0 %v1042
        %1165 = vmatprep.subr.mxu0 %v1045
        %1166 = vmatpush1.msra.mxu0 %v1044
        %1167 = vmatprep.subr.mxu0 %v1047
        %1168 = vmatpush1.msra.mxu0 %v1046
        %1169 = vmatprep.subr.mxu0 %v1049
        %1170 = vmatpush1.msra.mxu0 %v1048
        %1171 = vmatprep.subr.mxu0 %v1051
        %1172 = vmatpush1.msra.mxu0 %v1050
        %1173 = vmatprep.subr.mxu0 %v1053
        %1174 = vmatpush1.msra.mxu0 %v1052
        %1175 = vmatprep.subr.mxu0 0.0
        %1176 = vmatpush1.msra.mxu0 0.0
        %1177 = vmatprep.subr.mxu0 0.0
        %1178 = vmatpush1.msra.mxu0 0.0
        %1179 = vmatprep.subr.mxu0 0.0
        %1180 = vmatpush1.msra.mxu0 0.0
        %1181 = vmatprep.subr.mxu0 0.0
        %1182 = vmatpush1.msra.mxu0 0.0
        %1183 = vmatprep.subr.mxu0 0.0
        %1184 = vmatpush1.msra.mxu0 0.0
        %1185 = vmatprep.subr.mxu0 0.0
        %1186 = vmatpush1.msra.mxu0 0.0
        %1187 = vmatprep.subr.mxu0 0.0
        %1188 = vmatpush1.msra.mxu0 0.0
        %1189 = vmatprep.subr.mxu0 0.0
        %1190 = vmatpush1.msra.mxu0 0.0
        %1191 = vmatprep.subr.mxu0 0.0
        %1192 = vmatpush1.msra.mxu0 0.0
        %1193 = vmatprep.subr.mxu0 0.0
        %1194 = vmatpush1.msra.mxu0 0.0
        %1195 = vmatprep.subr.mxu0 0.0
        %1196 = vmatpush1.msra.mxu0 0.0
        %1197 = vmatprep.subr.mxu0 0.0
        %1198 = vmatpush1.msra.mxu0 0.0
        %1199 = vmatprep.subr.mxu0 0.0
        %1200 = vmatpush1.msra.mxu0 0.0
        %1201 = vmatprep.subr.mxu0 0.0
        %1202 = vmatpush1.msra.mxu0 0.0
        %1203 = vmatprep.subr.mxu0 0.0
        %1204 = vmatpush1.msra.mxu0 0.0
        %1205 = vmatprep.subr.mxu0 0.0
        %1206 = vmatpush1.msra.mxu0 0.0
        %1207 = vmatprep.subr.mxu0 0.0
        %1208 = vmatpush1.msra.mxu0 0.0
        %1209 = vmatprep.subr.mxu0 0.0
        %1210 = vmatpush1.msra.mxu0 0.0
        %1211 = vmatprep.subr.mxu0 0.0
        %1212 = vmatpush1.msra.mxu0 0.0
        %1213 = vmatprep.subr.mxu0 0.0
        %1214 = vmatpush1.msra.mxu0 0.0
        %1215 = vmatprep.mubr.f32.mxu0 0.0
        %1216 = vmatmul.mubr.f32.gmra.mrb[0].mxu0 %v1116
        %v1217 = vpop.f32.mrb[0].mxu0
        %v1218 = vadd.f32 %v1069, %v1217
        %v1219 = vpop.f32.mrb[0].mxu0
        %v1220 = vadd.f32 %v1069, %v1219
        %1221 = vmatprep.mubr.f32.mxu0 0.0
        %1222 = vmatmul.mubr.f32.gmra.mrb[0].mxu0 %v1119
        %v1223 = vpop.f32.mrb[0].mxu0
        %v1224 = vadd.f32 %v1073, %v1223
        %v1225 = vpop.f32.mrb[0].mxu0
        %v1226 = vadd.f32 %v1073, %v1225
        %1227 = vmatprep.mubr.f32.mxu0 0.0
        %1228 = vmatmul.mubr.f32.gmra.mrb[0].mxu0 %v1122
        %v1229 = vpop.f32.mrb[0].mxu0
        %v1230 = vadd.f32 %v1077, %v1229
        %v1231 = vpop.f32.mrb[0].mxu0
        %v1232 = vadd.f32 %v1077, %v1231
        %1233 = vmatprep.mubr.f32.mxu0 0.0
        %1234 = vmatmul.mubr.f32.gmra.mrb[0].mxu0 %v1125
        %v1235 = vpop.f32.mrb[0].mxu0
        %v1236 = vadd.f32 %v1081, %v1235
        %v1237 = vpop.f32.mrb[0].mxu0
        %v1238 = vadd.f32 %v1081, %v1237
        %1239 = vmatprep.mubr.f32.mxu0 0.0
        %1240 = vmatmul.mubr.f32.gmra.mrb[0].mxu0 %v1128
        %v1241 = vpop.f32.mrb[0].mxu0
        %v1242 = vadd.f32 %v1085, %v1241
        %v1243 = vpop.f32.mrb[0].mxu0
        %v1244 = vadd.f32 %v1085, %v1243
        %1245 = vmatprep.mubr.f32.mxu0 0.0
        %1246 = vmatmul.mubr.f32.gmra.mrb[0].mxu0 %v1131
        %v1247 = vpop.f32.mrb[0].mxu0
        %v1248 = vadd.f32 %v1089, %v1247
        %v1249 = vpop.f32.mrb[0].mxu0
        %v1250 = vadd.f32 %v1089, %v1249
        %1251 = vmatprep.mubr.f32.mxu0 0.0
        %1252 = vmatmul.mubr.f32.gmra.mrb[0].mxu0 %v1134
        %v1253 = vpop.f32.mrb[0].mxu0
        %v1254 = vadd.f32 %v1093, %v1253
        %v1255 = vpop.f32.mrb[0].mxu0
        %v1256 = vadd.f32 %v1093, %v1255
        %1257 = vmatprep.mubr.f32.mxu0 0.0
        %1258 = vmatmul.mubr.f32.gmra.mrb[0].mxu0 %v1137
        %v1259 = vpop.f32.mrb[0].mxu0
        %v1260 = vadd.f32 %v1097, %v1259
        %v1261 = vpop.f32.mrb[0].mxu0
        %v1262 = vadd.f32 %v1097, %v1261
        %1263 = vmatprep.mubr.f32.mxu0 0.0
        %1264 = vmatmul.mubr.f32.gmra.mrb[0].mxu0 %v1140
        %v1265 = vpop.f32.mrb[0].mxu0
        %v1266 = vadd.f32 %v1101, %v1265
        %v1267 = vpop.f32.mrb[0].mxu0
        %v1268 = vadd.f32 %v1101, %v1267
        %1269 = vmatprep.mubr.f32.mxu0 0.0
        %1270 = vmatmul.mubr.f32.gmra.mrb[0].mxu0 %v1143
        %v1271 = vpop.f32.mrb[0].mxu0
        %v1272 = vadd.f32 %v1105, %v1271
        %v1273 = vpop.f32.mrb[0].mxu0
        %v1274 = vadd.f32 %v1105, %v1273
        %1275 = vmatprep.mubr.f32.mxu0 0.0
        %1276 = vmatmul.mubr.f32.gmra.mrb[0].mxu0 %v1146
        %v1277 = vpop.f32.mrb[0].mxu0
        %v1278 = vadd.f32 %v1109, %v1277
        %v1279 = vpop.f32.mrb[0].mxu0
        %v1280 = vadd.f32 %v1109, %v1279
        %1281 = vmatprep.mubr.f32.mxu0 0.0
        %1282 = vmatmul.mubr.f32.gmra.mrb[0].mxu0 %v1149
        %v1283 = vpop.f32.mrb[0].mxu0
        %v1284 = vadd.f32 %v1113, %v1283
        %v1285 = vpop.f32.mrb[0].mxu0
        %v1286 = vadd.f32 %v1113, %v1285
        %1287 = vdwg.mxu0
        %v1288 = vtanh.pop %v1218
        %v1289 = vtanh.pop %v1220
        %v1290 = vtanh.pop %v1224
        %v1291 = vtanh.pop %v1226
        %v1292 = vtanh.pop %v1230
        %v1293 = vtanh.pop %v1232
        %v1294 = vtanh.pop %v1236
        %v1295 = vtanh.pop %v1238
        %v1296 = vtanh.pop %v1242
        %v1297 = vtanh.pop %v1244
        %v1298 = vtanh.pop %v1248
        %v1299 = vtanh.pop %v1250
        %v1300 = vtanh.pop %v1254
        %v1301 = vtanh.pop %v1256
        %v1302 = vtanh.pop %v1260
        %v1303 = vtanh.pop %v1262
        %v1304 = vtanh.pop %v1266
        %v1305 = vtanh.pop %v1268
        %v1306 = vtanh.pop %v1272
        %v1307 = vtanh.pop %v1274
        %v1308 = vtanh.pop %v1278
        %v1309 = vtanh.pop %v1280
        %v1310 = vtanh.pop %v1284
        %v1311 = vtanh.pop %v1286
        %s1312 = scalar_lea.vmem [#allocation2], 384
        %v1313 = vld [vmem:[%s1312] sm:$0xff]
        %v1314 = vld [vmem:[%s1312 + $0x8] sm:$0xff]
        %v1315 = vld [vmem:[%s1312 + $0x10] sm:$0xff]
        %v1316 = vld [vmem:[%s1312 + $0x18] sm:$0xff]
        %v1317 = vld [vmem:[%s1312 + $0x20] sm:$0xff]
        %v1318 = vld [vmem:[%s1312 + $0x28] sm:$0xff]
        %v1319 = vld [vmem:[%s1312 + $0x30] sm:$0xff]
        %v1320 = vld [vmem:[%s1312 + $0x38] sm:$0xff]
        %v1321 = vld [vmem:[%s1312 + $0x40] sm:$0xff]
        %v1322 = vld [vmem:[%s1312 + $0x48] sm:$0xff]
        %v1323 = vld [vmem:[%s1312 + $0x50] sm:$0xff]
        %v1324 = vld [vmem:[%s1312 + $0x58] sm:$0xff]
        %1325 = vset.pattern.permute.xlu0 4
        %1326 = vperm.xlu0 %1325, %v417
        %v1327 = vpop.permute.xlu0 %1326
        %1329 = vset.pattern.permute.xlu0 4
        %1330 = vperm.xlu0 %1329, %v418
        %v1331 = vpop.permute.xlu0 %1330
        %1333 = vset.pattern.permute.xlu0 4
        %1334 = vperm.xlu0 %1333, %v419
        %v1335 = vpop.permute.xlu0 %1334
        %1337 = vset.pattern.permute.xlu0 4
        %1338 = vperm.xlu0 %1337, %v420
        %v1339 = vpop.permute.xlu0 %1338
        %1341 = vset.pattern.permute.xlu0 4
        %1342 = vperm.xlu0 %1341, %v421
        %v1343 = vpop.permute.xlu0 %1342
        %1345 = vset.pattern.permute.xlu0 4
        %1346 = vperm.xlu0 %1345, %v422
        %v1347 = vpop.permute.xlu0 %1346
        %1349 = vset.pattern.permute.xlu0 4
        %1350 = vperm.xlu0 %1349, %v423
        %v1351 = vpop.permute.xlu0 %1350
        %1353 = vset.pattern.permute.xlu0 4
        %1354 = vperm.xlu0 %1353, %v424
        %v1355 = vpop.permute.xlu0 %1354
        %1357 = vset.pattern.permute.xlu0 4
        %1358 = vperm.xlu0 %1357, %v425
        %v1359 = vpop.permute.xlu0 %1358
        %1361 = vset.pattern.permute.xlu0 4
        %1362 = vperm.xlu0 %1361, %v426
        %v1363 = vpop.permute.xlu0 %1362
        %1365 = vset.pattern.permute.xlu0 4
        %1366 = vperm.xlu0 %1365, %v427
        %v1367 = vpop.permute.xlu0 %1366
        %1369 = vset.pattern.permute.xlu0 4
        %1370 = vperm.xlu0 %1369, %v428
        %v1371 = vpop.permute.xlu0 %1370
        %v1374 = vsel %vm598, %v1313, 0
        %v1377 = vsel %vm598, %v1314, 0
        %v1380 = vsel %vm598, %v1315, 0
        %v1383 = vsel %vm598, %v1316, 0
        %v1386 = vsel %vm598, %v1317, 0
        %v1389 = vsel %vm598, %v1318, 0
        %v1392 = vsel %vm598, %v1319, 0
        %v1395 = vsel %vm598, %v1320, 0
        %v1398 = vsel %vm598, %v1321, 0
        %v1401 = vsel %vm598, %v1322, 0
        %v1404 = vsel %vm598, %v1323, 0
        %v1407 = vsel %vm598, %v1324, 0
        %1409 = vmatprep.subr.mxu0 %v1289
        %1410 = vmatpush1.msra.mxu0 %v1288
        %1411 = vmatprep.subr.mxu0 %v1291
        %1412 = vmatpush1.msra.mxu0 %v1290
        %1413 = vmatprep.subr.mxu0 %v1293
        %1414 = vmatpush1.msra.mxu0 %v1292
        %1415 = vmatprep.subr.mxu0 %v1295
        %1416 = vmatpush1.msra.mxu0 %v1294
        %1417 = vmatprep.subr.mxu0 %v1297
        %1418 = vmatpush1.msra.mxu0 %v1296
        %1419 = vmatprep.subr.mxu0 %v1299
        %1420 = vmatpush1.msra.mxu0 %v1298
        %1421 = vmatprep.subr.mxu0 %v1301
        %1422 = vmatpush1.msra.mxu0 %v1300
        %1423 = vmatprep.subr.mxu0 %v1303
        %1424 = vmatpush1.msra.mxu0 %v1302
        %1425 = vmatprep.subr.mxu0 %v1305
        %1426 = vmatpush1.msra.mxu0 %v1304
        %1427 = vmatprep.subr.mxu0 %v1307
        %1428 = vmatpush1.msra.mxu0 %v1306
        %1429 = vmatprep.subr.mxu0 %v1309
        %1430 = vmatpush1.msra.mxu0 %v1308
        %1431 = vmatprep.subr.mxu0 %v1311
        %1432 = vmatpush1.msra.mxu0 %v1310
        %1433 = vmatprep.subr.mxu0 0.0
        %1434 = vmatpush1.msra.mxu0 0.0
        %1435 = vmatprep.subr.mxu0 0.0
        %1436 = vmatpush1.msra.mxu0 0.0
        %1437 = vmatprep.subr.mxu0 0.0
        %1438 = vmatpush1.msra.mxu0 0.0
        %1439 = vmatprep.subr.mxu0 0.0
        %1440 = vmatpush1.msra.mxu0 0.0
        %1441 = vmatprep.subr.mxu0 0.0
        %1442 = vmatpush1.msra.mxu0 0.0
        %1443 = vmatprep.subr.mxu0 0.0
        %1444 = vmatpush1.msra.mxu0 0.0
        %1445 = vmatprep.subr.mxu0 0.0
        %1446 = vmatpush1.msra.mxu0 0.0
        %1447 = vmatprep.subr.mxu0 0.0
        %1448 = vmatpush1.msra.mxu0 0.0
        %1449 = vmatprep.subr.mxu0 0.0
        %1450 = vmatpush1.msra.mxu0 0.0
        %1451 = vmatprep.subr.mxu0 0.0
        %1452 = vmatpush1.msra.mxu0 0.0
        %1453 = vmatprep.subr.mxu0 0.0
        %1454 = vmatpush1.msra.mxu0 0.0
        %1455 = vmatprep.subr.mxu0 0.0
        %1456 = vmatpush1.msra.mxu0 0.0
        %1457 = vmatprep.subr.mxu0 0.0
        %1458 = vmatpush1.msra.mxu0 0.0
        %1459 = vmatprep.subr.mxu0 0.0
        %1460 = vmatpush1.msra.mxu0 0.0
        %1461 = vmatprep.subr.mxu0 0.0
        %1462 = vmatpush1.msra.mxu0 0.0
        %1463 = vmatprep.subr.mxu0 0.0
        %1464 = vmatpush1.msra.mxu0 0.0
        %1465 = vmatprep.subr.mxu0 0.0
        %1466 = vmatpush1.msra.mxu0 0.0
        %1467 = vmatprep.subr.mxu0 0.0
        %1468 = vmatpush1.msra.mxu0 0.0
        %1469 = vmatprep.subr.mxu0 0.0
        %1470 = vmatpush1.msra.mxu0 0.0
        %1471 = vmatprep.subr.mxu0 0.0
        %1472 = vmatpush1.msra.mxu0 0.0
        %1473 = vmatprep.mubr.f32.mxu0 0.0
        %1474 = vmatmul.mubr.f32.gmra.mrb[0].mxu0 %v1374
        %v1475 = vpop.f32.mrb[0].mxu0
        %v1476 = vadd.f32 %v1327, %v1475
        %v1477 = vpop.f32.mrb[0].mxu0
        %v1478 = vadd.f32 %v1327, %v1477
        %1479 = vmatprep.mubr.f32.mxu0 0.0
        %1480 = vmatmul.mubr.f32.gmra.mrb[0].mxu0 %v1377
        %v1481 = vpop.f32.mrb[0].mxu0
        %v1482 = vadd.f32 %v1331, %v1481
        %v1483 = vpop.f32.mrb[0].mxu0
        %v1484 = vadd.f32 %v1331, %v1483
        %1485 = vmatprep.mubr.f32.mxu0 0.0
        %1486 = vmatmul.mubr.f32.gmra.mrb[0].mxu0 %v1380
        %v1487 = vpop.f32.mrb[0].mxu0
        %v1488 = vadd.f32 %v1335, %v1487
        %v1489 = vpop.f32.mrb[0].mxu0
        %v1490 = vadd.f32 %v1335, %v1489
        %1491 = vmatprep.mubr.f32.mxu0 0.0
        %1492 = vmatmul.mubr.f32.gmra.mrb[0].mxu0 %v1383
        %v1493 = vpop.f32.mrb[0].mxu0
        %v1494 = vadd.f32 %v1339, %v1493
        %v1495 = vpop.f32.mrb[0].mxu0
        %v1496 = vadd.f32 %v1339, %v1495
        %1497 = vmatprep.mubr.f32.mxu0 0.0
        %1498 = vmatmul.mubr.f32.gmra.mrb[0].mxu0 %v1386
        %v1499 = vpop.f32.mrb[0].mxu0
        %v1500 = vadd.f32 %v1343, %v1499
        %v1501 = vpop.f32.mrb[0].mxu0
        %v1502 = vadd.f32 %v1343, %v1501
        %1503 = vmatprep.mubr.f32.mxu0 0.0
        %1504 = vmatmul.mubr.f32.gmra.mrb[0].mxu0 %v1389
        %v1505 = vpop.f32.mrb[0].mxu0
        %v1506 = vadd.f32 %v1347, %v1505
        %v1507 = vpop.f32.mrb[0].mxu0
        %v1508 = vadd.f32 %v1347, %v1507
        %1509 = vmatprep.mubr.f32.mxu0 0.0
        %1510 = vmatmul.mubr.f32.gmra.mrb[0].mxu0 %v1392
        %v1511 = vpop.f32.mrb[0].mxu0
        %v1512 = vadd.f32 %v1351, %v1511
        %v1513 = vpop.f32.mrb[0].mxu0
        %v1514 = vadd.f32 %v1351, %v1513
        %1515 = vmatprep.mubr.f32.mxu0 0.0
        %1516 = vmatmul.mubr.f32.gmra.mrb[0].mxu0 %v1395
        %v1517 = vpop.f32.mrb[0].mxu0
        %v1518 = vadd.f32 %v1355, %v1517
        %v1519 = vpop.f32.mrb[0].mxu0
        %v1520 = vadd.f32 %v1355, %v1519
        %1521 = vmatprep.mubr.f32.mxu0 0.0
        %1522 = vmatmul.mubr.f32.gmra.mrb[0].mxu0 %v1398
        %v1523 = vpop.f32.mrb[0].mxu0
        %v1524 = vadd.f32 %v1359, %v1523
        %v1525 = vpop.f32.mrb[0].mxu0
        %v1526 = vadd.f32 %v1359, %v1525
        %1527 = vmatprep.mubr.f32.mxu0 0.0
        %1528 = vmatmul.mubr.f32.gmra.mrb[0].mxu0 %v1401
        %v1529 = vpop.f32.mrb[0].mxu0
        %v1530 = vadd.f32 %v1363, %v1529
        %v1531 = vpop.f32.mrb[0].mxu0
        %v1532 = vadd.f32 %v1363, %v1531
        %1533 = vmatprep.mubr.f32.mxu0 0.0
        %1534 = vmatmul.mubr.f32.gmra.mrb[0].mxu0 %v1404
        %v1535 = vpop.f32.mrb[0].mxu0
        %v1536 = vadd.f32 %v1367, %v1535
        %v1537 = vpop.f32.mrb[0].mxu0
        %v1538 = vadd.f32 %v1367, %v1537
        %1539 = vmatprep.mubr.f32.mxu0 0.0
        %1540 = vmatmul.mubr.f32.gmra.mrb[0].mxu0 %v1407
        %v1541 = vpop.f32.mrb[0].mxu0
        %v1542 = vadd.f32 %v1371, %v1541
        %v1543 = vpop.f32.mrb[0].mxu0
        %v1544 = vadd.f32 %v1371, %v1543
        %1545 = vdwg.mxu0
        %v1546 = vtanh.pop %v1476
        %v1547 = vtanh.pop %v1478
        %v1548 = vtanh.pop %v1482
        %v1549 = vtanh.pop %v1484
        %v1550 = vtanh.pop %v1488
        %v1551 = vtanh.pop %v1490
        %v1552 = vtanh.pop %v1494
        %v1553 = vtanh.pop %v1496
        %v1554 = vtanh.pop %v1500
        %v1555 = vtanh.pop %v1502
        %v1556 = vtanh.pop %v1506
        %v1557 = vtanh.pop %v1508
        %v1558 = vtanh.pop %v1512
        %v1559 = vtanh.pop %v1514
        %v1560 = vtanh.pop %v1518
        %v1561 = vtanh.pop %v1520
        %v1562 = vtanh.pop %v1524
        %v1563 = vtanh.pop %v1526
        %v1564 = vtanh.pop %v1530
        %v1565 = vtanh.pop %v1532
        %v1566 = vtanh.pop %v1536
        %v1567 = vtanh.pop %v1538
        %v1568 = vtanh.pop %v1542
        %v1569 = vtanh.pop %v1544
        %s1570 = scalar_lea.vmem [#allocation2], 480
        %v1571 = vld [vmem:[%s1570] sm:$0xff]
        %v1572 = vld [vmem:[%s1570 + $0x8] sm:$0xff]
        %v1573 = vld [vmem:[%s1570 + $0x10] sm:$0xff]
        %v1574 = vld [vmem:[%s1570 + $0x18] sm:$0xff]
        %v1575 = vld [vmem:[%s1570 + $0x20] sm:$0xff]
        %v1576 = vld [vmem:[%s1570 + $0x28] sm:$0xff]
        %v1577 = vld [vmem:[%s1570 + $0x30] sm:$0xff]
        %v1578 = vld [vmem:[%s1570 + $0x38] sm:$0xff]
        %v1579 = vld [vmem:[%s1570 + $0x40] sm:$0xff]
        %v1580 = vld [vmem:[%s1570 + $0x48] sm:$0xff]
        %v1581 = vld [vmem:[%s1570 + $0x50] sm:$0xff]
        %v1582 = vld [vmem:[%s1570 + $0x58] sm:$0xff]
        %1583 = vset.pattern.permute.xlu0 5
        %1584 = vperm.xlu0 %1583, %v417
        %v1585 = vpop.permute.xlu0 %1584
        %1587 = vset.pattern.permute.xlu0 5
        %1588 = vperm.xlu0 %1587, %v418
        %v1589 = vpop.permute.xlu0 %1588
        %1591 = vset.pattern.permute.xlu0 5
        %1592 = vperm.xlu0 %1591, %v419
        %v1593 = vpop.permute.xlu0 %1592
        %1595 = vset.pattern.permute.xlu0 5
        %1596 = vperm.xlu0 %1595, %v420
        %v1597 = vpop.permute.xlu0 %1596
        %1599 = vset.pattern.permute.xlu0 5
        %1600 = vperm.xlu0 %1599, %v421
        %v1601 = vpop.permute.xlu0 %1600
        %1603 = vset.pattern.permute.xlu0 5
        %1604 = vperm.xlu0 %1603, %v422
        %v1605 = vpop.permute.xlu0 %1604
        %1607 = vset.pattern.permute.xlu0 5
        %1608 = vperm.xlu0 %1607, %v423
        %v1609 = vpop.permute.xlu0 %1608
        %1611 = vset.pattern.permute.xlu0 5
        %1612 = vperm.xlu0 %1611, %v424
        %v1613 = vpop.permute.xlu0 %1612
        %1615 = vset.pattern.permute.xlu0 5
        %1616 = vperm.xlu0 %1615, %v425
        %v1617 = vpop.permute.xlu0 %1616
        %1619 = vset.pattern.permute.xlu0 5
        %1620 = vperm.xlu0 %1619, %v426
        %v1621 = vpop.permute.xlu0 %1620
        %1623 = vset.pattern.permute.xlu0 5
        %1624 = vperm.xlu0 %1623, %v427
        %v1625 = vpop.permute.xlu0 %1624
        %1627 = vset.pattern.permute.xlu0 5
        %1628 = vperm.xlu0 %1627, %v428
        %v1629 = vpop.permute.xlu0 %1628
        %v1632 = vsel %vm598, %v1571, 0
        %v1635 = vsel %vm598, %v1572, 0
        %v1638 = vsel %vm598, %v1573, 0
        %v1641 = vsel %vm598, %v1574, 0
        %v1644 = vsel %vm598, %v1575, 0
        %v1647 = vsel %vm598, %v1576, 0
        %v1650 = vsel %vm598, %v1577, 0
        %v1653 = vsel %vm598, %v1578, 0
        %v1656 = vsel %vm598, %v1579, 0
        %v1659 = vsel %vm598, %v1580, 0
        %v1662 = vsel %vm598, %v1581, 0
        %v1665 = vsel %vm598, %v1582, 0
        %1667 = vmatprep.subr.mxu0 %v1547
        %1668 = vmatpush1.msra.mxu0 %v1546
        %1669 = vmatprep.subr.mxu0 %v1549
        %1670 = vmatpush1.msra.mxu0 %v1548
        %1671 = vmatprep.subr.mxu0 %v1551
        %1672 = vmatpush1.msra.mxu0 %v1550
        %1673 = vmatprep.subr.mxu0 %v1553
        %1674 = vmatpush1.msra.mxu0 %v1552
        %1675 = vmatprep.subr.mxu0 %v1555
        %1676 = vmatpush1.msra.mxu0 %v1554
        %1677 = vmatprep.subr.mxu0 %v1557
        %1678 = vmatpush1.msra.mxu0 %v1556
        %1679 = vmatprep.subr.mxu0 %v1559
        %1680 = vmatpush1.msra.mxu0 %v1558
        %1681 = vmatprep.subr.mxu0 %v1561
        %1682 = vmatpush1.msra.mxu0 %v1560
        %1683 = vmatprep.subr.mxu0 %v1563
        %1684 = vmatpush1.msra.mxu0 %v1562
        %1685 = vmatprep.subr.mxu0 %v1565
        %1686 = vmatpush1.msra.mxu0 %v1564
        %1687 = vmatprep.subr.mxu0 %v1567
        %1688 = vmatpush1.msra.mxu0 %v1566
        %1689 = vmatprep.subr.mxu0 %v1569
        %1690 = vmatpush1.msra.mxu0 %v1568
        %1691 = vmatprep.subr.mxu0 0.0
        %1692 = vmatpush1.msra.mxu0 0.0
        %1693 = vmatprep.subr.mxu0 0.0
        %1694 = vmatpush1.msra.mxu0 0.0
        %1695 = vmatprep.subr.mxu0 0.0
        %1696 = vmatpush1.msra.mxu0 0.0
        %1697 = vmatprep.subr.mxu0 0.0
        %1698 = vmatpush1.msra.mxu0 0.0
        %1699 = vmatprep.subr.mxu0 0.0
        %1700 = vmatpush1.msra.mxu0 0.0
        %1701 = vmatprep.subr.mxu0 0.0
        %1702 = vmatpush1.msra.mxu0 0.0
        %1703 = vmatprep.subr.mxu0 0.0
        %1704 = vmatpush1.msra.mxu0 0.0
        %1705 = vmatprep.subr.mxu0 0.0
        %1706 = vmatpush1.msra.mxu0 0.0
        %1707 = vmatprep.subr.mxu0 0.0
        %1708 = vmatpush1.msra.mxu0 0.0
        %1709 = vmatprep.subr.mxu0 0.0
        %1710 = vmatpush1.msra.mxu0 0.0
        %1711 = vmatprep.subr.mxu0 0.0
        %1712 = vmatpush1.msra.mxu0 0.0
        %1713 = vmatprep.subr.mxu0 0.0
        %1714 = vmatpush1.msra.mxu0 0.0
        %1715 = vmatprep.subr.mxu0 0.0
        %1716 = vmatpush1.msra.mxu0 0.0
        %1717 = vmatprep.subr.mxu0 0.0
        %1718 = vmatpush1.msra.mxu0 0.0
        %1719 = vmatprep.subr.mxu0 0.0
        %1720 = vmatpush1.msra.mxu0 0.0
        %1721 = vmatprep.subr.mxu0 0.0
        %1722 = vmatpush1.msra.mxu0 0.0
        %1723 = vmatprep.subr.mxu0 0.0
        %1724 = vmatpush1.msra.mxu0 0.0
        %1725 = vmatprep.subr.mxu0 0.0
        %1726 = vmatpush1.msra.mxu0 0.0
        %1727 = vmatprep.subr.mxu0 0.0
        %1728 = vmatpush1.msra.mxu0 0.0
        %1729 = vmatprep.subr.mxu0 0.0
        %1730 = vmatpush1.msra.mxu0 0.0
        %1731 = vmatprep.mubr.f32.mxu0 0.0
        %1732 = vmatmul.mubr.f32.gmra.mrb[0].mxu0 %v1632
        %v1733 = vpop.f32.mrb[0].mxu0
        %v1734 = vadd.f32 %v1585, %v1733
        %v1735 = vpop.f32.mrb[0].mxu0
        %v1736 = vadd.f32 %v1585, %v1735
        %1737 = vmatprep.mubr.f32.mxu0 0.0
        %1738 = vmatmul.mubr.f32.gmra.mrb[0].mxu0 %v1635
        %v1739 = vpop.f32.mrb[0].mxu0
        %v1740 = vadd.f32 %v1589, %v1739
        %v1741 = vpop.f32.mrb[0].mxu0
        %v1742 = vadd.f32 %v1589, %v1741
        %1743 = vmatprep.mubr.f32.mxu0 0.0
        %1744 = vmatmul.mubr.f32.gmra.mrb[0].mxu0 %v1638
        %v1745 = vpop.f32.mrb[0].mxu0
        %v1746 = vadd.f32 %v1593, %v1745
        %v1747 = vpop.f32.mrb[0].mxu0
        %v1748 = vadd.f32 %v1593, %v1747
        %1749 = vmatprep.mubr.f32.mxu0 0.0
        %1750 = vmatmul.mubr.f32.gmra.mrb[0].mxu0 %v1641
        %v1751 = vpop.f32.mrb[0].mxu0
        %v1752 = vadd.f32 %v1597, %v1751
        %v1753 = vpop.f32.mrb[0].mxu0
        %v1754 = vadd.f32 %v1597, %v1753
        %1755 = vmatprep.mubr.f32.mxu0 0.0
        %1756 = vmatmul.mubr.f32.gmra.mrb[0].mxu0 %v1644
        %v1757 = vpop.f32.mrb[0].mxu0
        %v1758 = vadd.f32 %v1601, %v1757
        %v1759 = vpop.f32.mrb[0].mxu0
        %v1760 = vadd.f32 %v1601, %v1759
        %1761 = vmatprep.mubr.f32.mxu0 0.0
        %1762 = vmatmul.mubr.f32.gmra.mrb[0].mxu0 %v1647
        %v1763 = vpop.f32.mrb[0].mxu0
        %v1764 = vadd.f32 %v1605, %v1763
        %v1765 = vpop.f32.mrb[0].mxu0
        %v1766 = vadd.f32 %v1605, %v1765
        %1767 = vmatprep.mubr.f32.mxu0 0.0
        %1768 = vmatmul.mubr.f32.gmra.mrb[0].mxu0 %v1650
        %v1769 = vpop.f32.mrb[0].mxu0
        %v1770 = vadd.f32 %v1609, %v1769
        %v1771 = vpop.f32.mrb[0].mxu0
        %v1772 = vadd.f32 %v1609, %v1771
        %1773 = vmatprep.mubr.f32.mxu0 0.0
        %1774 = vmatmul.mubr.f32.gmra.mrb[0].mxu0 %v1653
        %v1775 = vpop.f32.mrb[0].mxu0
        %v1776 = vadd.f32 %v1613, %v1775
        %v1777 = vpop.f32.mrb[0].mxu0
        %v1778 = vadd.f32 %v1613, %v1777
        %1779 = vmatprep.mubr.f32.mxu0 0.0
        %1780 = vmatmul.mubr.f32.gmra.mrb[0].mxu0 %v1656
        %v1781 = vpop.f32.mrb[0].mxu0
        %v1782 = vadd.f32 %v1617, %v1781
        %v1783 = vpop.f32.mrb[0].mxu0
        %v1784 = vadd.f32 %v1617, %v1783
        %1785 = vmatprep.mubr.f32.mxu0 0.0
        %1786 = vmatmul.mubr.f32.gmra.mrb[0].mxu0 %v1659
        %v1787 = vpop.f32.mrb[0].mxu0
        %v1788 = vadd.f32 %v1621, %v1787
        %v1789 = vpop.f32.mrb[0].mxu0
        %v1790 = vadd.f32 %v1621, %v1789
        %1791 = vmatprep.mubr.f32.mxu0 0.0
        %1792 = vmatmul.mubr.f32.gmra.mrb[0].mxu0 %v1662
        %v1793 = vpop.f32.mrb[0].mxu0
        %v1794 = vadd.f32 %v1625, %v1793
        %v1795 = vpop.f32.mrb[0].mxu0
        %v1796 = vadd.f32 %v1625, %v1795
        %1797 = vmatprep.mubr.f32.mxu0 0.0
        %1798 = vmatmul.mubr.f32.gmra.mrb[0].mxu0 %v1665
        %v1799 = vpop.f32.mrb[0].mxu0
        %v1800 = vadd.f32 %v1629, %v1799
        %v1801 = vpop.f32.mrb[0].mxu0
        %v1802 = vadd.f32 %v1629, %v1801
        %1803 = vdwg.mxu0
        %v1804 = vtanh.pop %v1734
        %v1805 = vtanh.pop %v1736
        %v1806 = vtanh.pop %v1740
        %v1807 = vtanh.pop %v1742
        %v1808 = vtanh.pop %v1746
        %v1809 = vtanh.pop %v1748
        %v1810 = vtanh.pop %v1752
        %v1811 = vtanh.pop %v1754
        %v1812 = vtanh.pop %v1758
        %v1813 = vtanh.pop %v1760
        %v1814 = vtanh.pop %v1764
        %v1815 = vtanh.pop %v1766
        %v1816 = vtanh.pop %v1770
        %v1817 = vtanh.pop %v1772
        %v1818 = vtanh.pop %v1776
        %v1819 = vtanh.pop %v1778
        %v1820 = vtanh.pop %v1782
        %v1821 = vtanh.pop %v1784
        %v1822 = vtanh.pop %v1788
        %v1823 = vtanh.pop %v1790
        %v1824 = vtanh.pop %v1794
        %v1825 = vtanh.pop %v1796
        %v1826 = vtanh.pop %v1800
        %v1827 = vtanh.pop %v1802
        %s1828 = scalar_lea.vmem [#allocation2], 576
        %v1829 = vld [vmem:[%s1828] sm:$0xff]
        %v1830 = vld [vmem:[%s1828 + $0x8] sm:$0xff]
        %v1831 = vld [vmem:[%s1828 + $0x10] sm:$0xff]
        %v1832 = vld [vmem:[%s1828 + $0x18] sm:$0xff]
        %v1833 = vld [vmem:[%s1828 + $0x20] sm:$0xff]
        %v1834 = vld [vmem:[%s1828 + $0x28] sm:$0xff]
        %v1835 = vld [vmem:[%s1828 + $0x30] sm:$0xff]
        %v1836 = vld [vmem:[%s1828 + $0x38] sm:$0xff]
        %v1837 = vld [vmem:[%s1828 + $0x40] sm:$0xff]
        %v1838 = vld [vmem:[%s1828 + $0x48] sm:$0xff]
        %v1839 = vld [vmem:[%s1828 + $0x50] sm:$0xff]
        %v1840 = vld [vmem:[%s1828 + $0x58] sm:$0xff]
        %1841 = vset.pattern.permute.xlu0 6
        %1842 = vperm.xlu0 %1841, %v417
        %v1843 = vpop.permute.xlu0 %1842
        %1845 = vset.pattern.permute.xlu0 6
        %1846 = vperm.xlu0 %1845, %v418
        %v1847 = vpop.permute.xlu0 %1846
        %1849 = vset.pattern.permute.xlu0 6
        %1850 = vperm.xlu0 %1849, %v419
        %v1851 = vpop.permute.xlu0 %1850
        %1853 = vset.pattern.permute.xlu0 6
        %1854 = vperm.xlu0 %1853, %v420
        %v1855 = vpop.permute.xlu0 %1854
        %1857 = vset.pattern.permute.xlu0 6
        %1858 = vperm.xlu0 %1857, %v421
        %v1859 = vpop.permute.xlu0 %1858
        %1861 = vset.pattern.permute.xlu0 6
        %1862 = vperm.xlu0 %1861, %v422
        %v1863 = vpop.permute.xlu0 %1862
        %1865 = vset.pattern.permute.xlu0 6
        %1866 = vperm.xlu0 %1865, %v423
        %v1867 = vpop.permute.xlu0 %1866
        %1869 = vset.pattern.permute.xlu0 6
        %1870 = vperm.xlu0 %1869, %v424
        %v1871 = vpop.permute.xlu0 %1870
        %1873 = vset.pattern.permute.xlu0 6
        %1874 = vperm.xlu0 %1873, %v425
        %v1875 = vpop.permute.xlu0 %1874
        %1877 = vset.pattern.permute.xlu0 6
        %1878 = vperm.xlu0 %1877, %v426
        %v1879 = vpop.permute.xlu0 %1878
        %1881 = vset.pattern.permute.xlu0 6
        %1882 = vperm.xlu0 %1881, %v427
        %v1883 = vpop.permute.xlu0 %1882
        %1885 = vset.pattern.permute.xlu0 6
        %1886 = vperm.xlu0 %1885, %v428
        %v1887 = vpop.permute.xlu0 %1886
        %v1890 = vsel %vm598, %v1829, 0
        %v1893 = vsel %vm598, %v1830, 0
        %v1896 = vsel %vm598, %v1831, 0
        %v1899 = vsel %vm598, %v1832, 0
        %v1902 = vsel %vm598, %v1833, 0
        %v1905 = vsel %vm598, %v1834, 0
        %v1908 = vsel %vm598, %v1835, 0
        %v1911 = vsel %vm598, %v1836, 0
        %v1914 = vsel %vm598, %v1837, 0
        %v1917 = vsel %vm598, %v1838, 0
        %v1920 = vsel %vm598, %v1839, 0
        %v1923 = vsel %vm598, %v1840, 0
        %1925 = vmatprep.subr.mxu0 %v1805
        %1926 = vmatpush1.msra.mxu0 %v1804
        %1927 = vmatprep.subr.mxu0 %v1807
        %1928 = vmatpush1.msra.mxu0 %v1806
        %1929 = vmatprep.subr.mxu0 %v1809
        %1930 = vmatpush1.msra.mxu0 %v1808
        %1931 = vmatprep.subr.mxu0 %v1811
        %1932 = vmatpush1.msra.mxu0 %v1810
        %1933 = vmatprep.subr.mxu0 %v1813
        %1934 = vmatpush1.msra.mxu0 %v1812
        %1935 = vmatprep.subr.mxu0 %v1815
        %1936 = vmatpush1.msra.mxu0 %v1814
        %1937 = vmatprep.subr.mxu0 %v1817
        %1938 = vmatpush1.msra.mxu0 %v1816
        %1939 = vmatprep.subr.mxu0 %v1819
        %1940 = vmatpush1.msra.mxu0 %v1818
        %1941 = vmatprep.subr.mxu0 %v1821
        %1942 = vmatpush1.msra.mxu0 %v1820
        %1943 = vmatprep.subr.mxu0 %v1823
        %1944 = vmatpush1.msra.mxu0 %v1822
        %1945 = vmatprep.subr.mxu0 %v1825
        %1946 = vmatpush1.msra.mxu0 %v1824
        %1947 = vmatprep.subr.mxu0 %v1827
        %1948 = vmatpush1.msra.mxu0 %v1826
        %1949 = vmatprep.subr.mxu0 0.0
        %1950 = vmatpush1.msra.mxu0 0.0
        %1951 = vmatprep.subr.mxu0 0.0
        %1952 = vmatpush1.msra.mxu0 0.0
        %1953 = vmatprep.subr.mxu0 0.0
        %1954 = vmatpush1.msra.mxu0 0.0
        %1955 = vmatprep.subr.mxu0 0.0
        %1956 = vmatpush1.msra.mxu0 0.0
        %1957 = vmatprep.subr.mxu0 0.0
        %1958 = vmatpush1.msra.mxu0 0.0
        %1959 = vmatprep.subr.mxu0 0.0
        %1960 = vmatpush1.msra.mxu0 0.0
        %1961 = vmatprep.subr.mxu0 0.0
        %1962 = vmatpush1.msra.mxu0 0.0
        %1963 = vmatprep.subr.mxu0 0.0
        %1964 = vmatpush1.msra.mxu0 0.0
        %1965 = vmatprep.subr.mxu0 0.0
        %1966 = vmatpush1.msra.mxu0 0.0
        %1967 = vmatprep.subr.mxu0 0.0
        %1968 = vmatpush1.msra.mxu0 0.0
        %1969 = vmatprep.subr.mxu0 0.0
        %1970 = vmatpush1.msra.mxu0 0.0
        %1971 = vmatprep.subr.mxu0 0.0
        %1972 = vmatpush1.msra.mxu0 0.0
        %1973 = vmatprep.subr.mxu0 0.0
        %1974 = vmatpush1.msra.mxu0 0.0
        %1975 = vmatprep.subr.mxu0 0.0
        %1976 = vmatpush1.msra.mxu0 0.0
        %1977 = vmatprep.subr.mxu0 0.0
        %1978 = vmatpush1.msra.mxu0 0.0
        %1979 = vmatprep.subr.mxu0 0.0
        %1980 = vmatpush1.msra.mxu0 0.0
        %1981 = vmatprep.subr.mxu0 0.0
        %1982 = vmatpush1.msra.mxu0 0.0
        %1983 = vmatprep.subr.mxu0 0.0
        %1984 = vmatpush1.msra.mxu0 0.0
        %1985 = vmatprep.subr.mxu0 0.0
        %1986 = vmatpush1.msra.mxu0 0.0
        %1987 = vmatprep.subr.mxu0 0.0
        %1988 = vmatpush1.msra.mxu0 0.0
        %1989 = vmatprep.mubr.f32.mxu0 0.0
        %1990 = vmatmul.mubr.f32.gmra.mrb[0].mxu0 %v1890
        %v1991 = vpop.f32.mrb[0].mxu0
        %v1992 = vadd.f32 %v1843, %v1991
        %v1993 = vpop.f32.mrb[0].mxu0
        %v1994 = vadd.f32 %v1843, %v1993
        %1995 = vmatprep.mubr.f32.mxu0 0.0
        %1996 = vmatmul.mubr.f32.gmra.mrb[0].mxu0 %v1893
        %v1997 = vpop.f32.mrb[0].mxu0
        %v1998 = vadd.f32 %v1847, %v1997
        %v1999 = vpop.f32.mrb[0].mxu0
        %v2000 = vadd.f32 %v1847, %v1999
        %2001 = vmatprep.mubr.f32.mxu0 0.0
        %2002 = vmatmul.mubr.f32.gmra.mrb[0].mxu0 %v1896
        %v2003 = vpop.f32.mrb[0].mxu0
        %v2004 = vadd.f32 %v1851, %v2003
        %v2005 = vpop.f32.mrb[0].mxu0
        %v2006 = vadd.f32 %v1851, %v2005
        %2007 = vmatprep.mubr.f32.mxu0 0.0
        %2008 = vmatmul.mubr.f32.gmra.mrb[0].mxu0 %v1899
        %v2009 = vpop.f32.mrb[0].mxu0
        %v2010 = vadd.f32 %v1855, %v2009
        %v2011 = vpop.f32.mrb[0].mxu0
        %v2012 = vadd.f32 %v1855, %v2011
        %2013 = vmatprep.mubr.f32.mxu0 0.0
        %2014 = vmatmul.mubr.f32.gmra.mrb[0].mxu0 %v1902
        %v2015 = vpop.f32.mrb[0].mxu0
        %v2016 = vadd.f32 %v1859, %v2015
        %v2017 = vpop.f32.mrb[0].mxu0
        %v2018 = vadd.f32 %v1859, %v2017
        %2019 = vmatprep.mubr.f32.mxu0 0.0
        %2020 = vmatmul.mubr.f32.gmra.mrb[0].mxu0 %v1905
        %v2021 = vpop.f32.mrb[0].mxu0
        %v2022 = vadd.f32 %v1863, %v2021
        %v2023 = vpop.f32.mrb[0].mxu0
        %v2024 = vadd.f32 %v1863, %v2023
        %2025 = vmatprep.mubr.f32.mxu0 0.0
        %2026 = vmatmul.mubr.f32.gmra.mrb[0].mxu0 %v1908
        %v2027 = vpop.f32.mrb[0].mxu0
        %v2028 = vadd.f32 %v1867, %v2027
        %v2029 = vpop.f32.mrb[0].mxu0
        %v2030 = vadd.f32 %v1867, %v2029
        %2031 = vmatprep.mubr.f32.mxu0 0.0
        %2032 = vmatmul.mubr.f32.gmra.mrb[0].mxu0 %v1911
        %v2033 = vpop.f32.mrb[0].mxu0
        %v2034 = vadd.f32 %v1871, %v2033
        %v2035 = vpop.f32.mrb[0].mxu0
        %v2036 = vadd.f32 %v1871, %v2035
        %2037 = vmatprep.mubr.f32.mxu0 0.0
        %2038 = vmatmul.mubr.f32.gmra.mrb[0].mxu0 %v1914
        %v2039 = vpop.f32.mrb[0].mxu0
        %v2040 = vadd.f32 %v1875, %v2039
        %v2041 = vpop.f32.mrb[0].mxu0
        %v2042 = vadd.f32 %v1875, %v2041
        %2043 = vmatprep.mubr.f32.mxu0 0.0
        %2044 = vmatmul.mubr.f32.gmra.mrb[0].mxu0 %v1917
        %v2045 = vpop.f32.mrb[0].mxu0
        %v2046 = vadd.f32 %v1879, %v2045
        %v2047 = vpop.f32.mrb[0].mxu0
        %v2048 = vadd.f32 %v1879, %v2047
        %2049 = vmatprep.mubr.f32.mxu0 0.0
        %2050 = vmatmul.mubr.f32.gmra.mrb[0].mxu0 %v1920
        %v2051 = vpop.f32.mrb[0].mxu0
        %v2052 = vadd.f32 %v1883, %v2051
        %v2053 = vpop.f32.mrb[0].mxu0
        %v2054 = vadd.f32 %v1883, %v2053
        %2055 = vmatprep.mubr.f32.mxu0 0.0
        %2056 = vmatmul.mubr.f32.gmra.mrb[0].mxu0 %v1923
        %v2057 = vpop.f32.mrb[0].mxu0
        %v2058 = vadd.f32 %v1887, %v2057
        %v2059 = vpop.f32.mrb[0].mxu0
        %v2060 = vadd.f32 %v1887, %v2059
        %2061 = vdwg.mxu0
        %v2062 = vtanh.pop %v1992
        %v2063 = vtanh.pop %v1994
        %v2064 = vtanh.pop %v1998
        %v2065 = vtanh.pop %v2000
        %v2066 = vtanh.pop %v2004
        %v2067 = vtanh.pop %v2006
        %v2068 = vtanh.pop %v2010
        %v2069 = vtanh.pop %v2012
        %v2070 = vtanh.pop %v2016
        %v2071 = vtanh.pop %v2018
        %v2072 = vtanh.pop %v2022
        %v2073 = vtanh.pop %v2024
        %v2074 = vtanh.pop %v2028
        %v2075 = vtanh.pop %v2030
        %v2076 = vtanh.pop %v2034
        %v2077 = vtanh.pop %v2036
        %v2078 = vtanh.pop %v2040
        %v2079 = vtanh.pop %v2042
        %v2080 = vtanh.pop %v2046
        %v2081 = vtanh.pop %v2048
        %v2082 = vtanh.pop %v2052
        %v2083 = vtanh.pop %v2054
        %v2084 = vtanh.pop %v2058
        %v2085 = vtanh.pop %v2060
        %s2086 = scalar_lea.vmem [#allocation2], 672
        %v2087 = vld [vmem:[%s2086] sm:$0xff]
        %v2088 = vld [vmem:[%s2086 + $0x8] sm:$0xff]
        %v2089 = vld [vmem:[%s2086 + $0x10] sm:$0xff]
        %v2090 = vld [vmem:[%s2086 + $0x18] sm:$0xff]
        %v2091 = vld [vmem:[%s2086 + $0x20] sm:$0xff]
        %v2092 = vld [vmem:[%s2086 + $0x28] sm:$0xff]
        %v2093 = vld [vmem:[%s2086 + $0x30] sm:$0xff]
        %v2094 = vld [vmem:[%s2086 + $0x38] sm:$0xff]
        %v2095 = vld [vmem:[%s2086 + $0x40] sm:$0xff]
        %v2096 = vld [vmem:[%s2086 + $0x48] sm:$0xff]
        %v2097 = vld [vmem:[%s2086 + $0x50] sm:$0xff]
        %v2098 = vld [vmem:[%s2086 + $0x58] sm:$0xff]
        %2099 = vset.pattern.permute.xlu0 7
        %2100 = vperm.xlu0 %2099, %v417
        %v2101 = vpop.permute.xlu0 %2100
        %2103 = vset.pattern.permute.xlu0 7
        %2104 = vperm.xlu0 %2103, %v418
        %v2105 = vpop.permute.xlu0 %2104
        %2107 = vset.pattern.permute.xlu0 7
        %2108 = vperm.xlu0 %2107, %v419
        %v2109 = vpop.permute.xlu0 %2108
        %2111 = vset.pattern.permute.xlu0 7
        %2112 = vperm.xlu0 %2111, %v420
        %v2113 = vpop.permute.xlu0 %2112
        %2115 = vset.pattern.permute.xlu0 7
        %2116 = vperm.xlu0 %2115, %v421
        %v2117 = vpop.permute.xlu0 %2116
        %2119 = vset.pattern.permute.xlu0 7
        %2120 = vperm.xlu0 %2119, %v422
        %v2121 = vpop.permute.xlu0 %2120
        %2123 = vset.pattern.permute.xlu0 7
        %2124 = vperm.xlu0 %2123, %v423
        %v2125 = vpop.permute.xlu0 %2124
        %2127 = vset.pattern.permute.xlu0 7
        %2128 = vperm.xlu0 %2127, %v424
        %v2129 = vpop.permute.xlu0 %2128
        %2131 = vset.pattern.permute.xlu0 7
        %2132 = vperm.xlu0 %2131, %v425
        %v2133 = vpop.permute.xlu0 %2132
        %2135 = vset.pattern.permute.xlu0 7
        %2136 = vperm.xlu0 %2135, %v426
        %v2137 = vpop.permute.xlu0 %2136
        %2139 = vset.pattern.permute.xlu0 7
        %2140 = vperm.xlu0 %2139, %v427
        %v2141 = vpop.permute.xlu0 %2140
        %2143 = vset.pattern.permute.xlu0 7
        %2144 = vperm.xlu0 %2143, %v428
        %v2145 = vpop.permute.xlu0 %2144
        %v2148 = vsel %vm598, %v2087, 0
        %v2151 = vsel %vm598, %v2088, 0
        %v2154 = vsel %vm598, %v2089, 0
        %v2157 = vsel %vm598, %v2090, 0
        %v2160 = vsel %vm598, %v2091, 0
        %v2163 = vsel %vm598, %v2092, 0
        %v2166 = vsel %vm598, %v2093, 0
        %v2169 = vsel %vm598, %v2094, 0
        %v2172 = vsel %vm598, %v2095, 0
        %v2175 = vsel %vm598, %v2096, 0
        %v2178 = vsel %vm598, %v2097, 0
        %v2181 = vsel %vm598, %v2098, 0
        %2183 = vmatprep.subr.mxu0 %v2063
        %2184 = vmatpush1.msra.mxu0 %v2062
        %2185 = vmatprep.subr.mxu0 %v2065
        %2186 = vmatpush1.msra.mxu0 %v2064
        %2187 = vmatprep.subr.mxu0 %v2067
        %2188 = vmatpush1.msra.mxu0 %v2066
        %2189 = vmatprep.subr.mxu0 %v2069
        %2190 = vmatpush1.msra.mxu0 %v2068
        %2191 = vmatprep.subr.mxu0 %v2071
        %2192 = vmatpush1.msra.mxu0 %v2070
        %2193 = vmatprep.subr.mxu0 %v2073
        %2194 = vmatpush1.msra.mxu0 %v2072
        %2195 = vmatprep.subr.mxu0 %v2075
        %2196 = vmatpush1.msra.mxu0 %v2074
        %2197 = vmatprep.subr.mxu0 %v2077
        %2198 = vmatpush1.msra.mxu0 %v2076
        %2199 = vmatprep.subr.mxu0 %v2079
        %2200 = vmatpush1.msra.mxu0 %v2078
        %2201 = vmatprep.subr.mxu0 %v2081
        %2202 = vmatpush1.msra.mxu0 %v2080
        %2203 = vmatprep.subr.mxu0 %v2083
        %2204 = vmatpush1.msra.mxu0 %v2082
        %2205 = vmatprep.subr.mxu0 %v2085
        %2206 = vmatpush1.msra.mxu0 %v2084
        %2207 = vmatprep.subr.mxu0 0.0
        %2208 = vmatpush1.msra.mxu0 0.0
        %2209 = vmatprep.subr.mxu0 0.0
        %2210 = vmatpush1.msra.mxu0 0.0
        %2211 = vmatprep.subr.mxu0 0.0
        %2212 = vmatpush1.msra.mxu0 0.0
        %2213 = vmatprep.subr.mxu0 0.0
        %2214 = vmatpush1.msra.mxu0 0.0
        %2215 = vmatprep.subr.mxu0 0.0
        %2216 = vmatpush1.msra.mxu0 0.0
        %2217 = vmatprep.subr.mxu0 0.0
        %2218 = vmatpush1.msra.mxu0 0.0
        %2219 = vmatprep.subr.mxu0 0.0
        %2220 = vmatpush1.msra.mxu0 0.0
        %2221 = vmatprep.subr.mxu0 0.0
        %2222 = vmatpush1.msra.mxu0 0.0
        %2223 = vmatprep.subr.mxu0 0.0
        %2224 = vmatpush1.msra.mxu0 0.0
        %2225 = vmatprep.subr.mxu0 0.0
        %2226 = vmatpush1.msra.mxu0 0.0
        %2227 = vmatprep.subr.mxu0 0.0
        %2228 = vmatpush1.msra.mxu0 0.0
        %2229 = vmatprep.subr.mxu0 0.0
        %2230 = vmatpush1.msra.mxu0 0.0
        %2231 = vmatprep.subr.mxu0 0.0
        %2232 = vmatpush1.msra.mxu0 0.0
        %2233 = vmatprep.subr.mxu0 0.0
        %2234 = vmatpush1.msra.mxu0 0.0
        %2235 = vmatprep.subr.mxu0 0.0
        %2236 = vmatpush1.msra.mxu0 0.0
        %2237 = vmatprep.subr.mxu0 0.0
        %2238 = vmatpush1.msra.mxu0 0.0
        %2239 = vmatprep.subr.mxu0 0.0
        %2240 = vmatpush1.msra.mxu0 0.0
        %2241 = vmatprep.subr.mxu0 0.0
        %2242 = vmatpush1.msra.mxu0 0.0
        %2243 = vmatprep.subr.mxu0 0.0
        %2244 = vmatpush1.msra.mxu0 0.0
        %2245 = vmatprep.subr.mxu0 0.0
        %2246 = vmatpush1.msra.mxu0 0.0
        %2247 = vmatprep.mubr.f32.mxu0 0.0
        %2248 = vmatmul.mubr.f32.gmra.mrb[0].mxu0 %v2148
        %v2249 = vpop.f32.mrb[0].mxu0
        %v2250 = vadd.f32 %v2101, %v2249
        %v2251 = vpop.f32.mrb[0].mxu0
        %v2252 = vadd.f32 %v2101, %v2251
        %2253 = vmatprep.mubr.f32.mxu0 0.0
        %2254 = vmatmul.mubr.f32.gmra.mrb[0].mxu0 %v2151
        %v2255 = vpop.f32.mrb[0].mxu0
        %v2256 = vadd.f32 %v2105, %v2255
        %v2257 = vpop.f32.mrb[0].mxu0
        %v2258 = vadd.f32 %v2105, %v2257
        %2259 = vmatprep.mubr.f32.mxu0 0.0
        %2260 = vmatmul.mubr.f32.gmra.mrb[0].mxu0 %v2154
        %v2261 = vpop.f32.mrb[0].mxu0
        %v2262 = vadd.f32 %v2109, %v2261
        %v2263 = vpop.f32.mrb[0].mxu0
        %v2264 = vadd.f32 %v2109, %v2263
        %2265 = vmatprep.mubr.f32.mxu0 0.0
        %2266 = vmatmul.mubr.f32.gmra.mrb[0].mxu0 %v2157
        %v2267 = vpop.f32.mrb[0].mxu0
        %v2268 = vadd.f32 %v2113, %v2267
        %v2269 = vpop.f32.mrb[0].mxu0
        %v2270 = vadd.f32 %v2113, %v2269
        %2271 = vmatprep.mubr.f32.mxu0 0.0
        %2272 = vmatmul.mubr.f32.gmra.mrb[0].mxu0 %v2160
        %v2273 = vpop.f32.mrb[0].mxu0
        %v2274 = vadd.f32 %v2117, %v2273
        %v2275 = vpop.f32.mrb[0].mxu0
        %v2276 = vadd.f32 %v2117, %v2275
        %2277 = vmatprep.mubr.f32.mxu0 0.0
        %2278 = vmatmul.mubr.f32.gmra.mrb[0].mxu0 %v2163
        %v2279 = vpop.f32.mrb[0].mxu0
        %v2280 = vadd.f32 %v2121, %v2279
        %v2281 = vpop.f32.mrb[0].mxu0
        %v2282 = vadd.f32 %v2121, %v2281
        %2283 = vmatprep.mubr.f32.mxu0 0.0
        %2284 = vmatmul.mubr.f32.gmra.mrb[0].mxu0 %v2166
        %v2285 = vpop.f32.mrb[0].mxu0
        %v2286 = vadd.f32 %v2125, %v2285
        %v2287 = vpop.f32.mrb[0].mxu0
        %v2288 = vadd.f32 %v2125, %v2287
        %2289 = vmatprep.mubr.f32.mxu0 0.0
        %2290 = vmatmul.mubr.f32.gmra.mrb[0].mxu0 %v2169
        %v2291 = vpop.f32.mrb[0].mxu0
        %v2292 = vadd.f32 %v2129, %v2291
        %v2293 = vpop.f32.mrb[0].mxu0
        %v2294 = vadd.f32 %v2129, %v2293
        %2295 = vmatprep.mubr.f32.mxu0 0.0
        %2296 = vmatmul.mubr.f32.gmra.mrb[0].mxu0 %v2172
        %v2297 = vpop.f32.mrb[0].mxu0
        %v2298 = vadd.f32 %v2133, %v2297
        %v2299 = vpop.f32.mrb[0].mxu0
        %v2300 = vadd.f32 %v2133, %v2299
        %2301 = vmatprep.mubr.f32.mxu0 0.0
        %2302 = vmatmul.mubr.f32.gmra.mrb[0].mxu0 %v2175
        %v2303 = vpop.f32.mrb[0].mxu0
        %v2304 = vadd.f32 %v2137, %v2303
        %v2305 = vpop.f32.mrb[0].mxu0
        %v2306 = vadd.f32 %v2137, %v2305
        %2307 = vmatprep.mubr.f32.mxu0 0.0
        %2308 = vmatmul.mubr.f32.gmra.mrb[0].mxu0 %v2178
        %v2309 = vpop.f32.mrb[0].mxu0
        %v2310 = vadd.f32 %v2141, %v2309
        %v2311 = vpop.f32.mrb[0].mxu0
        %v2312 = vadd.f32 %v2141, %v2311
        %2313 = vmatprep.mubr.f32.mxu0 0.0
        %2314 = vmatmul.mubr.f32.gmra.mrb[0].mxu0 %v2181
        %v2315 = vpop.f32.mrb[0].mxu0
        %v2316 = vadd.f32 %v2145, %v2315
        %v2317 = vpop.f32.mrb[0].mxu0
        %v2318 = vadd.f32 %v2145, %v2317
        %2319 = vdwg.mxu0
        %v2320 = vtanh.pop %v2250
        %v2321 = vtanh.pop %v2252
        %v2322 = vtanh.pop %v2256
        %v2323 = vtanh.pop %v2258
        %v2324 = vtanh.pop %v2262
        %v2325 = vtanh.pop %v2264
        %v2326 = vtanh.pop %v2268
        %v2327 = vtanh.pop %v2270
        %v2328 = vtanh.pop %v2274
        %v2329 = vtanh.pop %v2276
        %v2330 = vtanh.pop %v2280
        %v2331 = vtanh.pop %v2282
        %v2332 = vtanh.pop %v2286
        %v2333 = vtanh.pop %v2288
        %v2334 = vtanh.pop %v2292
        %v2335 = vtanh.pop %v2294
        %v2336 = vtanh.pop %v2298
        %v2337 = vtanh.pop %v2300
        %v2338 = vtanh.pop %v2304
        %v2339 = vtanh.pop %v2306
        %v2340 = vtanh.pop %v2310
        %v2341 = vtanh.pop %v2312
        %v2342 = vtanh.pop %v2316
        %v2343 = vtanh.pop %v2318
        %s2344 = scalar_lea.vmem [#allocation2], 768
        %v2345 = vld [vmem:[%s2344] sm:$0xff]
        %v2346 = vld [vmem:[%s2344 + $0x8] sm:$0xff]
        %v2347 = vld [vmem:[%s2344 + $0x10] sm:$0xff]
        %v2348 = vld [vmem:[%s2344 + $0x18] sm:$0xff]
        %v2349 = vld [vmem:[%s2344 + $0x20] sm:$0xff]
        %v2350 = vld [vmem:[%s2344 + $0x28] sm:$0xff]
        %v2351 = vld [vmem:[%s2344 + $0x30] sm:$0xff]
        %v2352 = vld [vmem:[%s2344 + $0x38] sm:$0xff]
        %v2353 = vld [vmem:[%s2344 + $0x40] sm:$0xff]
        %v2354 = vld [vmem:[%s2344 + $0x48] sm:$0xff]
        %v2355 = vld [vmem:[%s2344 + $0x50] sm:$0xff]
        %v2356 = vld [vmem:[%s2344 + $0x58] sm:$0xff]
        %2357 = vset.pattern.permute.xlu0 8
        %2358 = vperm.xlu0 %2357, %v417
        %v2359 = vpop.permute.xlu0 %2358
        %2361 = vset.pattern.permute.xlu0 8
        %2362 = vperm.xlu0 %2361, %v418
        %v2363 = vpop.permute.xlu0 %2362
        %2365 = vset.pattern.permute.xlu0 8
        %2366 = vperm.xlu0 %2365, %v419
        %v2367 = vpop.permute.xlu0 %2366
        %2369 = vset.pattern.permute.xlu0 8
        %2370 = vperm.xlu0 %2369, %v420
        %v2371 = vpop.permute.xlu0 %2370
        %2373 = vset.pattern.permute.xlu0 8
        %2374 = vperm.xlu0 %2373, %v421
        %v2375 = vpop.permute.xlu0 %2374
        %2377 = vset.pattern.permute.xlu0 8
        %2378 = vperm.xlu0 %2377, %v422
        %v2379 = vpop.permute.xlu0 %2378
        %2381 = vset.pattern.permute.xlu0 8
        %2382 = vperm.xlu0 %2381, %v423
        %v2383 = vpop.permute.xlu0 %2382
        %2385 = vset.pattern.permute.xlu0 8
        %2386 = vperm.xlu0 %2385, %v424
        %v2387 = vpop.permute.xlu0 %2386
        %2389 = vset.pattern.permute.xlu0 8
        %2390 = vperm.xlu0 %2389, %v425
        %v2391 = vpop.permute.xlu0 %2390
        %2393 = vset.pattern.permute.xlu0 8
        %2394 = vperm.xlu0 %2393, %v426
        %v2395 = vpop.permute.xlu0 %2394
        %2397 = vset.pattern.permute.xlu0 8
        %2398 = vperm.xlu0 %2397, %v427
        %v2399 = vpop.permute.xlu0 %2398
        %2401 = vset.pattern.permute.xlu0 8
        %2402 = vperm.xlu0 %2401, %v428
        %v2403 = vpop.permute.xlu0 %2402
        %v2406 = vsel %vm598, %v2345, 0
        %v2409 = vsel %vm598, %v2346, 0
        %v2412 = vsel %vm598, %v2347, 0
        %v2415 = vsel %vm598, %v2348, 0
        %v2418 = vsel %vm598, %v2349, 0
        %v2421 = vsel %vm598, %v2350, 0
        %v2424 = vsel %vm598, %v2351, 0
        %v2427 = vsel %vm598, %v2352, 0
        %v2430 = vsel %vm598, %v2353, 0
        %v2433 = vsel %vm598, %v2354, 0
        %v2436 = vsel %vm598, %v2355, 0
        %v2439 = vsel %vm598, %v2356, 0
        %2441 = vmatprep.subr.mxu0 %v2321
        %2442 = vmatpush1.msra.mxu0 %v2320
        %2443 = vmatprep.subr.mxu0 %v2323
        %2444 = vmatpush1.msra.mxu0 %v2322
        %2445 = vmatprep.subr.mxu0 %v2325
        %2446 = vmatpush1.msra.mxu0 %v2324
        %2447 = vmatprep.subr.mxu0 %v2327
        %2448 = vmatpush1.msra.mxu0 %v2326
        %2449 = vmatprep.subr.mxu0 %v2329
        %2450 = vmatpush1.msra.mxu0 %v2328
        %2451 = vmatprep.subr.mxu0 %v2331
        %2452 = vmatpush1.msra.mxu0 %v2330
        %2453 = vmatprep.subr.mxu0 %v2333
        %2454 = vmatpush1.msra.mxu0 %v2332
        %2455 = vmatprep.subr.mxu0 %v2335
        %2456 = vmatpush1.msra.mxu0 %v2334
        %2457 = vmatprep.subr.mxu0 %v2337
        %2458 = vmatpush1.msra.mxu0 %v2336
        %2459 = vmatprep.subr.mxu0 %v2339
        %2460 = vmatpush1.msra.mxu0 %v2338
        %2461 = vmatprep.subr.mxu0 %v2341
        %2462 = vmatpush1.msra.mxu0 %v2340
        %2463 = vmatprep.subr.mxu0 %v2343
        %2464 = vmatpush1.msra.mxu0 %v2342
        %2465 = vmatprep.subr.mxu0 0.0
        %2466 = vmatpush1.msra.mxu0 0.0
        %2467 = vmatprep.subr.mxu0 0.0
        %2468 = vmatpush1.msra.mxu0 0.0
        %2469 = vmatprep.subr.mxu0 0.0
        %2470 = vmatpush1.msra.mxu0 0.0
        %2471 = vmatprep.subr.mxu0 0.0
        %2472 = vmatpush1.msra.mxu0 0.0
        %2473 = vmatprep.subr.mxu0 0.0
        %2474 = vmatpush1.msra.mxu0 0.0
        %2475 = vmatprep.subr.mxu0 0.0
        %2476 = vmatpush1.msra.mxu0 0.0
        %2477 = vmatprep.subr.mxu0 0.0
        %2478 = vmatpush1.msra.mxu0 0.0
        %2479 = vmatprep.subr.mxu0 0.0
        %2480 = vmatpush1.msra.mxu0 0.0
        %2481 = vmatprep.subr.mxu0 0.0
        %2482 = vmatpush1.msra.mxu0 0.0
        %2483 = vmatprep.subr.mxu0 0.0
        %2484 = vmatpush1.msra.mxu0 0.0
        %2485 = vmatprep.subr.mxu0 0.0
        %2486 = vmatpush1.msra.mxu0 0.0
        %2487 = vmatprep.subr.mxu0 0.0
        %2488 = vmatpush1.msra.mxu0 0.0
        %2489 = vmatprep.subr.mxu0 0.0
        %2490 = vmatpush1.msra.mxu0 0.0
        %2491 = vmatprep.subr.mxu0 0.0
        %2492 = vmatpush1.msra.mxu0 0.0
        %2493 = vmatprep.subr.mxu0 0.0
        %2494 = vmatpush1.msra.mxu0 0.0
        %2495 = vmatprep.subr.mxu0 0.0
        %2496 = vmatpush1.msra.mxu0 0.0
        %2497 = vmatprep.subr.mxu0 0.0
        %2498 = vmatpush1.msra.mxu0 0.0
        %2499 = vmatprep.subr.mxu0 0.0
        %2500 = vmatpush1.msra.mxu0 0.0
        %2501 = vmatprep.subr.mxu0 0.0
        %2502 = vmatpush1.msra.mxu0 0.0
        %2503 = vmatprep.subr.mxu0 0.0
        %2504 = vmatpush1.msra.mxu0 0.0
        %2505 = vmatprep.mubr.f32.mxu0 0.0
        %2506 = vmatmul.mubr.f32.gmra.mrb[0].mxu0 %v2406
        %v2507 = vpop.f32.mrb[0].mxu0
        %v2508 = vadd.f32 %v2359, %v2507
        %v2509 = vpop.f32.mrb[0].mxu0
        %v2510 = vadd.f32 %v2359, %v2509
        %2511 = vmatprep.mubr.f32.mxu0 0.0
        %2512 = vmatmul.mubr.f32.gmra.mrb[0].mxu0 %v2409
        %v2513 = vpop.f32.mrb[0].mxu0
        %v2514 = vadd.f32 %v2363, %v2513
        %v2515 = vpop.f32.mrb[0].mxu0
        %v2516 = vadd.f32 %v2363, %v2515
        %2517 = vmatprep.mubr.f32.mxu0 0.0
        %2518 = vmatmul.mubr.f32.gmra.mrb[0].mxu0 %v2412
        %v2519 = vpop.f32.mrb[0].mxu0
        %v2520 = vadd.f32 %v2367, %v2519
        %v2521 = vpop.f32.mrb[0].mxu0
        %v2522 = vadd.f32 %v2367, %v2521
        %2523 = vmatprep.mubr.f32.mxu0 0.0
        %2524 = vmatmul.mubr.f32.gmra.mrb[0].mxu0 %v2415
        %v2525 = vpop.f32.mrb[0].mxu0
        %v2526 = vadd.f32 %v2371, %v2525
        %v2527 = vpop.f32.mrb[0].mxu0
        %v2528 = vadd.f32 %v2371, %v2527
        %2529 = vmatprep.mubr.f32.mxu0 0.0
        %2530 = vmatmul.mubr.f32.gmra.mrb[0].mxu0 %v2418
        %v2531 = vpop.f32.mrb[0].mxu0
        %v2532 = vadd.f32 %v2375, %v2531
        %v2533 = vpop.f32.mrb[0].mxu0
        %v2534 = vadd.f32 %v2375, %v2533
        %2535 = vmatprep.mubr.f32.mxu0 0.0
        %2536 = vmatmul.mubr.f32.gmra.mrb[0].mxu0 %v2421
        %v2537 = vpop.f32.mrb[0].mxu0
        %v2538 = vadd.f32 %v2379, %v2537
        %v2539 = vpop.f32.mrb[0].mxu0
        %v2540 = vadd.f32 %v2379, %v2539
        %2541 = vmatprep.mubr.f32.mxu0 0.0
        %2542 = vmatmul.mubr.f32.gmra.mrb[0].mxu0 %v2424
        %v2543 = vpop.f32.mrb[0].mxu0
        %v2544 = vadd.f32 %v2383, %v2543
        %v2545 = vpop.f32.mrb[0].mxu0
        %v2546 = vadd.f32 %v2383, %v2545
        %2547 = vmatprep.mubr.f32.mxu0 0.0
        %2548 = vmatmul.mubr.f32.gmra.mrb[0].mxu0 %v2427
        %v2549 = vpop.f32.mrb[0].mxu0
        %v2550 = vadd.f32 %v2387, %v2549
        %v2551 = vpop.f32.mrb[0].mxu0
        %v2552 = vadd.f32 %v2387, %v2551
        %2553 = vmatprep.mubr.f32.mxu0 0.0
        %2554 = vmatmul.mubr.f32.gmra.mrb[0].mxu0 %v2430
        %v2555 = vpop.f32.mrb[0].mxu0
        %v2556 = vadd.f32 %v2391, %v2555
        %v2557 = vpop.f32.mrb[0].mxu0
        %v2558 = vadd.f32 %v2391, %v2557
        %2559 = vmatprep.mubr.f32.mxu0 0.0
        %2560 = vmatmul.mubr.f32.gmra.mrb[0].mxu0 %v2433
        %v2561 = vpop.f32.mrb[0].mxu0
        %v2562 = vadd.f32 %v2395, %v2561
        %v2563 = vpop.f32.mrb[0].mxu0
        %v2564 = vadd.f32 %v2395, %v2563
        %2565 = vmatprep.mubr.f32.mxu0 0.0
        %2566 = vmatmul.mubr.f32.gmra.mrb[0].mxu0 %v2436
        %v2567 = vpop.f32.mrb[0].mxu0
        %v2568 = vadd.f32 %v2399, %v2567
        %v2569 = vpop.f32.mrb[0].mxu0
        %v2570 = vadd.f32 %v2399, %v2569
        %2571 = vmatprep.mubr.f32.mxu0 0.0
        %2572 = vmatmul.mubr.f32.gmra.mrb[0].mxu0 %v2439
        %v2573 = vpop.f32.mrb[0].mxu0
        %v2574 = vadd.f32 %v2403, %v2573
        %v2575 = vpop.f32.mrb[0].mxu0
        %v2576 = vadd.f32 %v2403, %v2575
        %2577 = vdwg.mxu0
        %v2578 = vtanh.pop %v2508
        %v2579 = vtanh.pop %v2510
        %v2580 = vtanh.pop %v2514
        %v2581 = vtanh.pop %v2516
        %v2582 = vtanh.pop %v2520
        %v2583 = vtanh.pop %v2522
        %v2584 = vtanh.pop %v2526
        %v2585 = vtanh.pop %v2528
        %v2586 = vtanh.pop %v2532
        %v2587 = vtanh.pop %v2534
        %v2588 = vtanh.pop %v2538
        %v2589 = vtanh.pop %v2540
        %v2590 = vtanh.pop %v2544
        %v2591 = vtanh.pop %v2546
        %v2592 = vtanh.pop %v2550
        %v2593 = vtanh.pop %v2552
        %v2594 = vtanh.pop %v2556
        %v2595 = vtanh.pop %v2558
        %v2596 = vtanh.pop %v2562
        %v2597 = vtanh.pop %v2564
        %v2598 = vtanh.pop %v2568
        %v2599 = vtanh.pop %v2570
        %v2600 = vtanh.pop %v2574
        %v2601 = vtanh.pop %v2576
        %s2602 = scalar_lea.vmem [#allocation2], 864
        %v2603 = vld [vmem:[%s2602] sm:$0xff]
        %v2604 = vld [vmem:[%s2602 + $0x8] sm:$0xff]
        %v2605 = vld [vmem:[%s2602 + $0x10] sm:$0xff]
        %v2606 = vld [vmem:[%s2602 + $0x18] sm:$0xff]
        %v2607 = vld [vmem:[%s2602 + $0x20] sm:$0xff]
        %v2608 = vld [vmem:[%s2602 + $0x28] sm:$0xff]
        %v2609 = vld [vmem:[%s2602 + $0x30] sm:$0xff]
        %v2610 = vld [vmem:[%s2602 + $0x38] sm:$0xff]
        %v2611 = vld [vmem:[%s2602 + $0x40] sm:$0xff]
        %v2612 = vld [vmem:[%s2602 + $0x48] sm:$0xff]
        %v2613 = vld [vmem:[%s2602 + $0x50] sm:$0xff]
        %v2614 = vld [vmem:[%s2602 + $0x58] sm:$0xff]
        %2615 = vset.pattern.permute.xlu0 9
        %2616 = vperm.xlu0 %2615, %v417
        %v2617 = vpop.permute.xlu0 %2616
        %2619 = vset.pattern.permute.xlu0 9
        %2620 = vperm.xlu0 %2619, %v418
        %v2621 = vpop.permute.xlu0 %2620
        %2623 = vset.pattern.permute.xlu0 9
        %2624 = vperm.xlu0 %2623, %v419
        %v2625 = vpop.permute.xlu0 %2624
        %2627 = vset.pattern.permute.xlu0 9
        %2628 = vperm.xlu0 %2627, %v420
        %v2629 = vpop.permute.xlu0 %2628
        %2631 = vset.pattern.permute.xlu0 9
        %2632 = vperm.xlu0 %2631, %v421
        %v2633 = vpop.permute.xlu0 %2632
        %2635 = vset.pattern.permute.xlu0 9
        %2636 = vperm.xlu0 %2635, %v422
        %v2637 = vpop.permute.xlu0 %2636
        %2639 = vset.pattern.permute.xlu0 9
        %2640 = vperm.xlu0 %2639, %v423
        %v2641 = vpop.permute.xlu0 %2640
        %2643 = vset.pattern.permute.xlu0 9
        %2644 = vperm.xlu0 %2643, %v424
        %v2645 = vpop.permute.xlu0 %2644
        %2647 = vset.pattern.permute.xlu0 9
        %2648 = vperm.xlu0 %2647, %v425
        %v2649 = vpop.permute.xlu0 %2648
        %2651 = vset.pattern.permute.xlu0 9
        %2652 = vperm.xlu0 %2651, %v426
        %v2653 = vpop.permute.xlu0 %2652
        %2655 = vset.pattern.permute.xlu0 9
        %2656 = vperm.xlu0 %2655, %v427
        %v2657 = vpop.permute.xlu0 %2656
        %2659 = vset.pattern.permute.xlu0 9
        %2660 = vperm.xlu0 %2659, %v428
        %v2661 = vpop.permute.xlu0 %2660
        %v2664 = vsel %vm598, %v2603, 0
        %v2667 = vsel %vm598, %v2604, 0
        %v2670 = vsel %vm598, %v2605, 0
        %v2673 = vsel %vm598, %v2606, 0
        %v2676 = vsel %vm598, %v2607, 0
        %v2679 = vsel %vm598, %v2608, 0
        %v2682 = vsel %vm598, %v2609, 0
        %v2685 = vsel %vm598, %v2610, 0
        %v2688 = vsel %vm598, %v2611, 0
        %v2691 = vsel %vm598, %v2612, 0
        %v2694 = vsel %vm598, %v2613, 0
        %v2697 = vsel %vm598, %v2614, 0
        %2699 = vmatprep.subr.mxu0 %v2579
        %2700 = vmatpush1.msra.mxu0 %v2578
        %2701 = vmatprep.subr.mxu0 %v2581
        %2702 = vmatpush1.msra.mxu0 %v2580
        %2703 = vmatprep.subr.mxu0 %v2583
        %2704 = vmatpush1.msra.mxu0 %v2582
        %2705 = vmatprep.subr.mxu0 %v2585
        %2706 = vmatpush1.msra.mxu0 %v2584
        %2707 = vmatprep.subr.mxu0 %v2587
        %2708 = vmatpush1.msra.mxu0 %v2586
        %2709 = vmatprep.subr.mxu0 %v2589
        %2710 = vmatpush1.msra.mxu0 %v2588
        %2711 = vmatprep.subr.mxu0 %v2591
        %2712 = vmatpush1.msra.mxu0 %v2590
        %2713 = vmatprep.subr.mxu0 %v2593
        %2714 = vmatpush1.msra.mxu0 %v2592
        %2715 = vmatprep.subr.mxu0 %v2595
        %2716 = vmatpush1.msra.mxu0 %v2594
        %2717 = vmatprep.subr.mxu0 %v2597
        %2718 = vmatpush1.msra.mxu0 %v2596
        %2719 = vmatprep.subr.mxu0 %v2599
        %2720 = vmatpush1.msra.mxu0 %v2598
        %2721 = vmatprep.subr.mxu0 %v2601
        %2722 = vmatpush1.msra.mxu0 %v2600
        %2723 = vmatprep.subr.mxu0 0.0
        %2724 = vmatpush1.msra.mxu0 0.0
        %2725 = vmatprep.subr.mxu0 0.0
        %2726 = vmatpush1.msra.mxu0 0.0
        %2727 = vmatprep.subr.mxu0 0.0
        %2728 = vmatpush1.msra.mxu0 0.0
        %2729 = vmatprep.subr.mxu0 0.0
        %2730 = vmatpush1.msra.mxu0 0.0
        %2731 = vmatprep.subr.mxu0 0.0
        %2732 = vmatpush1.msra.mxu0 0.0
        %2733 = vmatprep.subr.mxu0 0.0
        %2734 = vmatpush1.msra.mxu0 0.0
        %2735 = vmatprep.subr.mxu0 0.0
        %2736 = vmatpush1.msra.mxu0 0.0
        %2737 = vmatprep.subr.mxu0 0.0
        %2738 = vmatpush1.msra.mxu0 0.0
        %2739 = vmatprep.subr.mxu0 0.0
        %2740 = vmatpush1.msra.mxu0 0.0
        %2741 = vmatprep.subr.mxu0 0.0
        %2742 = vmatpush1.msra.mxu0 0.0
        %2743 = vmatprep.subr.mxu0 0.0
        %2744 = vmatpush1.msra.mxu0 0.0
        %2745 = vmatprep.subr.mxu0 0.0
        %2746 = vmatpush1.msra.mxu0 0.0
        %2747 = vmatprep.subr.mxu0 0.0
        %2748 = vmatpush1.msra.mxu0 0.0
        %2749 = vmatprep.subr.mxu0 0.0
        %2750 = vmatpush1.msra.mxu0 0.0
        %2751 = vmatprep.subr.mxu0 0.0
        %2752 = vmatpush1.msra.mxu0 0.0
        %2753 = vmatprep.subr.mxu0 0.0
        %2754 = vmatpush1.msra.mxu0 0.0
        %2755 = vmatprep.subr.mxu0 0.0
        %2756 = vmatpush1.msra.mxu0 0.0
        %2757 = vmatprep.subr.mxu0 0.0
        %2758 = vmatpush1.msra.mxu0 0.0
        %2759 = vmatprep.subr.mxu0 0.0
        %2760 = vmatpush1.msra.mxu0 0.0
        %2761 = vmatprep.subr.mxu0 0.0
        %2762 = vmatpush1.msra.mxu0 0.0
        %2763 = vmatprep.mubr.f32.mxu0 0.0
        %2764 = vmatmul.mubr.f32.gmra.mrb[0].mxu0 %v2664
        %v2765 = vpop.f32.mrb[0].mxu0
        %v2766 = vadd.f32 %v2617, %v2765
        %v2767 = vpop.f32.mrb[0].mxu0
        %v2768 = vadd.f32 %v2617, %v2767
        %2769 = vmatprep.mubr.f32.mxu0 0.0
        %2770 = vmatmul.mubr.f32.gmra.mrb[0].mxu0 %v2667
        %v2771 = vpop.f32.mrb[0].mxu0
        %v2772 = vadd.f32 %v2621, %v2771
        %v2773 = vpop.f32.mrb[0].mxu0
        %v2774 = vadd.f32 %v2621, %v2773
        %2775 = vmatprep.mubr.f32.mxu0 0.0
        %2776 = vmatmul.mubr.f32.gmra.mrb[0].mxu0 %v2670
        %v2777 = vpop.f32.mrb[0].mxu0
        %v2778 = vadd.f32 %v2625, %v2777
        %v2779 = vpop.f32.mrb[0].mxu0
        %v2780 = vadd.f32 %v2625, %v2779
        %2781 = vmatprep.mubr.f32.mxu0 0.0
        %2782 = vmatmul.mubr.f32.gmra.mrb[0].mxu0 %v2673
        %v2783 = vpop.f32.mrb[0].mxu0
        %v2784 = vadd.f32 %v2629, %v2783
        %v2785 = vpop.f32.mrb[0].mxu0
        %v2786 = vadd.f32 %v2629, %v2785
        %2787 = vmatprep.mubr.f32.mxu0 0.0
        %2788 = vmatmul.mubr.f32.gmra.mrb[0].mxu0 %v2676
        %v2789 = vpop.f32.mrb[0].mxu0
        %v2790 = vadd.f32 %v2633, %v2789
        %v2791 = vpop.f32.mrb[0].mxu0
        %v2792 = vadd.f32 %v2633, %v2791
        %2793 = vmatprep.mubr.f32.mxu0 0.0
        %2794 = vmatmul.mubr.f32.gmra.mrb[0].mxu0 %v2679
        %v2795 = vpop.f32.mrb[0].mxu0
        %v2796 = vadd.f32 %v2637, %v2795
        %v2797 = vpop.f32.mrb[0].mxu0
        %v2798 = vadd.f32 %v2637, %v2797
        %2799 = vmatprep.mubr.f32.mxu0 0.0
        %2800 = vmatmul.mubr.f32.gmra.mrb[0].mxu0 %v2682
        %v2801 = vpop.f32.mrb[0].mxu0
        %v2802 = vadd.f32 %v2641, %v2801
        %v2803 = vpop.f32.mrb[0].mxu0
        %v2804 = vadd.f32 %v2641, %v2803
        %2805 = vmatprep.mubr.f32.mxu0 0.0
        %2806 = vmatmul.mubr.f32.gmra.mrb[0].mxu0 %v2685
        %v2807 = vpop.f32.mrb[0].mxu0
        %v2808 = vadd.f32 %v2645, %v2807
        %v2809 = vpop.f32.mrb[0].mxu0
        %v2810 = vadd.f32 %v2645, %v2809
        %2811 = vmatprep.mubr.f32.mxu0 0.0
        %2812 = vmatmul.mubr.f32.gmra.mrb[0].mxu0 %v2688
        %v2813 = vpop.f32.mrb[0].mxu0
        %v2814 = vadd.f32 %v2649, %v2813
        %v2815 = vpop.f32.mrb[0].mxu0
        %v2816 = vadd.f32 %v2649, %v2815
        %2817 = vmatprep.mubr.f32.mxu0 0.0
        %2818 = vmatmul.mubr.f32.gmra.mrb[0].mxu0 %v2691
        %v2819 = vpop.f32.mrb[0].mxu0
        %v2820 = vadd.f32 %v2653, %v2819
        %v2821 = vpop.f32.mrb[0].mxu0
        %v2822 = vadd.f32 %v2653, %v2821
        %2823 = vmatprep.mubr.f32.mxu0 0.0
        %2824 = vmatmul.mubr.f32.gmra.mrb[0].mxu0 %v2694
        %v2825 = vpop.f32.mrb[0].mxu0
        %v2826 = vadd.f32 %v2657, %v2825
        %v2827 = vpop.f32.mrb[0].mxu0
        %v2828 = vadd.f32 %v2657, %v2827
        %2829 = vmatprep.mubr.f32.mxu0 0.0
        %2830 = vmatmul.mubr.f32.gmra.mrb[0].mxu0 %v2697
        %v2831 = vpop.f32.mrb[0].mxu0
        %v2832 = vadd.f32 %v2661, %v2831
        %v2833 = vpop.f32.mrb[0].mxu0
        %v2834 = vadd.f32 %v2661, %v2833
        %2835 = vdwg.mxu0
        %v2836 = vtanh.pop %v2766
        %v2837 = vtanh.pop %v2768
        %v2838 = vtanh.pop %v2772
        %v2839 = vtanh.pop %v2774
        %v2840 = vtanh.pop %v2778
        %v2841 = vtanh.pop %v2780
        %v2842 = vtanh.pop %v2784
        %v2843 = vtanh.pop %v2786
        %v2844 = vtanh.pop %v2790
        %v2845 = vtanh.pop %v2792
        %v2846 = vtanh.pop %v2796
        %v2847 = vtanh.pop %v2798
        %v2848 = vtanh.pop %v2802
        %v2849 = vtanh.pop %v2804
        %v2850 = vtanh.pop %v2808
        %v2851 = vtanh.pop %v2810
        %v2852 = vtanh.pop %v2814
        %v2853 = vtanh.pop %v2816
        %v2854 = vtanh.pop %v2820
        %v2855 = vtanh.pop %v2822
        %v2856 = vtanh.pop %v2826
        %v2857 = vtanh.pop %v2828
        %v2858 = vtanh.pop %v2832
        %v2859 = vtanh.pop %v2834
        %s2860 = scalar_lea.vmem [#allocation2], 960
        %v2861 = vld [vmem:[%s2860] sm:$0xff]
        %v2862 = vld [vmem:[%s2860 + $0x8] sm:$0xff]
        %v2863 = vld [vmem:[%s2860 + $0x10] sm:$0xff]
        %v2864 = vld [vmem:[%s2860 + $0x18] sm:$0xff]
        %v2865 = vld [vmem:[%s2860 + $0x20] sm:$0xff]
        %v2866 = vld [vmem:[%s2860 + $0x28] sm:$0xff]
        %v2867 = vld [vmem:[%s2860 + $0x30] sm:$0xff]
        %v2868 = vld [vmem:[%s2860 + $0x38] sm:$0xff]
        %v2869 = vld [vmem:[%s2860 + $0x40] sm:$0xff]
        %v2870 = vld [vmem:[%s2860 + $0x48] sm:$0xff]
        %v2871 = vld [vmem:[%s2860 + $0x50] sm:$0xff]
        %v2872 = vld [vmem:[%s2860 + $0x58] sm:$0xff]
        %2873 = vset.pattern.permute.xlu0 10
        %2874 = vperm.xlu0 %2873, %v417
        %v2875 = vpop.permute.xlu0 %2874
        %2877 = vset.pattern.permute.xlu0 10
        %2878 = vperm.xlu0 %2877, %v418
        %v2879 = vpop.permute.xlu0 %2878
        %2881 = vset.pattern.permute.xlu0 10
        %2882 = vperm.xlu0 %2881, %v419
        %v2883 = vpop.permute.xlu0 %2882
        %2885 = vset.pattern.permute.xlu0 10
        %2886 = vperm.xlu0 %2885, %v420
        %v2887 = vpop.permute.xlu0 %2886
        %2889 = vset.pattern.permute.xlu0 10
        %2890 = vperm.xlu0 %2889, %v421
        %v2891 = vpop.permute.xlu0 %2890
        %2893 = vset.pattern.permute.xlu0 10
        %2894 = vperm.xlu0 %2893, %v422
        %v2895 = vpop.permute.xlu0 %2894
        %2897 = vset.pattern.permute.xlu0 10
        %2898 = vperm.xlu0 %2897, %v423
        %v2899 = vpop.permute.xlu0 %2898
        %2901 = vset.pattern.permute.xlu0 10
        %2902 = vperm.xlu0 %2901, %v424
        %v2903 = vpop.permute.xlu0 %2902
        %2905 = vset.pattern.permute.xlu0 10
        %2906 = vperm.xlu0 %2905, %v425
        %v2907 = vpop.permute.xlu0 %2906
        %2909 = vset.pattern.permute.xlu0 10
        %2910 = vperm.xlu0 %2909, %v426
        %v2911 = vpop.permute.xlu0 %2910
        %2913 = vset.pattern.permute.xlu0 10
        %2914 = vperm.xlu0 %2913, %v427
        %v2915 = vpop.permute.xlu0 %2914
        %2917 = vset.pattern.permute.xlu0 10
        %2918 = vperm.xlu0 %2917, %v428
        %v2919 = vpop.permute.xlu0 %2918
        %v2922 = vsel %vm598, %v2861, 0
        %v2925 = vsel %vm598, %v2862, 0
        %v2928 = vsel %vm598, %v2863, 0
        %v2931 = vsel %vm598, %v2864, 0
        %v2934 = vsel %vm598, %v2865, 0
        %v2937 = vsel %vm598, %v2866, 0
        %v2940 = vsel %vm598, %v2867, 0
        %v2943 = vsel %vm598, %v2868, 0
        %v2946 = vsel %vm598, %v2869, 0
        %v2949 = vsel %vm598, %v2870, 0
        %v2952 = vsel %vm598, %v2871, 0
        %v2955 = vsel %vm598, %v2872, 0
        %2957 = vmatprep.subr.mxu0 %v2837
        %2958 = vmatpush1.msra.mxu0 %v2836
        %2959 = vmatprep.subr.mxu0 %v2839
        %2960 = vmatpush1.msra.mxu0 %v2838
        %2961 = vmatprep.subr.mxu0 %v2841
        %2962 = vmatpush1.msra.mxu0 %v2840
        %2963 = vmatprep.subr.mxu0 %v2843
        %2964 = vmatpush1.msra.mxu0 %v2842
        %2965 = vmatprep.subr.mxu0 %v2845
        %2966 = vmatpush1.msra.mxu0 %v2844
        %2967 = vmatprep.subr.mxu0 %v2847
        %2968 = vmatpush1.msra.mxu0 %v2846
        %2969 = vmatprep.subr.mxu0 %v2849
        %2970 = vmatpush1.msra.mxu0 %v2848
        %2971 = vmatprep.subr.mxu0 %v2851
        %2972 = vmatpush1.msra.mxu0 %v2850
        %2973 = vmatprep.subr.mxu0 %v2853
        %2974 = vmatpush1.msra.mxu0 %v2852
        %2975 = vmatprep.subr.mxu0 %v2855
        %2976 = vmatpush1.msra.mxu0 %v2854
        %2977 = vmatprep.subr.mxu0 %v2857
        %2978 = vmatpush1.msra.mxu0 %v2856
        %2979 = vmatprep.subr.mxu0 %v2859
        %2980 = vmatpush1.msra.mxu0 %v2858
        %2981 = vmatprep.subr.mxu0 0.0
        %2982 = vmatpush1.msra.mxu0 0.0
        %2983 = vmatprep.subr.mxu0 0.0
        %2984 = vmatpush1.msra.mxu0 0.0
        %2985 = vmatprep.subr.mxu0 0.0
        %2986 = vmatpush1.msra.mxu0 0.0
        %2987 = vmatprep.subr.mxu0 0.0
        %2988 = vmatpush1.msra.mxu0 0.0
        %2989 = vmatprep.subr.mxu0 0.0
        %2990 = vmatpush1.msra.mxu0 0.0
        %2991 = vmatprep.subr.mxu0 0.0
        %2992 = vmatpush1.msra.mxu0 0.0
        %2993 = vmatprep.subr.mxu0 0.0
        %2994 = vmatpush1.msra.mxu0 0.0
        %2995 = vmatprep.subr.mxu0 0.0
        %2996 = vmatpush1.msra.mxu0 0.0
        %2997 = vmatprep.subr.mxu0 0.0
        %2998 = vmatpush1.msra.mxu0 0.0
        %2999 = vmatprep.subr.mxu0 0.0
        %3000 = vmatpush1.msra.mxu0 0.0
        %3001 = vmatprep.subr.mxu0 0.0
        %3002 = vmatpush1.msra.mxu0 0.0
        %3003 = vmatprep.subr.mxu0 0.0
        %3004 = vmatpush1.msra.mxu0 0.0
        %3005 = vmatprep.subr.mxu0 0.0
        %3006 = vmatpush1.msra.mxu0 0.0
        %3007 = vmatprep.subr.mxu0 0.0
        %3008 = vmatpush1.msra.mxu0 0.0
        %3009 = vmatprep.subr.mxu0 0.0
        %3010 = vmatpush1.msra.mxu0 0.0
        %3011 = vmatprep.subr.mxu0 0.0
        %3012 = vmatpush1.msra.mxu0 0.0
        %3013 = vmatprep.subr.mxu0 0.0
        %3014 = vmatpush1.msra.mxu0 0.0
        %3015 = vmatprep.subr.mxu0 0.0
        %3016 = vmatpush1.msra.mxu0 0.0
        %3017 = vmatprep.subr.mxu0 0.0
        %3018 = vmatpush1.msra.mxu0 0.0
        %3019 = vmatprep.subr.mxu0 0.0
        %3020 = vmatpush1.msra.mxu0 0.0
        %3021 = vmatprep.mubr.f32.mxu0 0.0
        %3022 = vmatmul.mubr.f32.gmra.mrb[0].mxu0 %v2922
        %v3023 = vpop.f32.mrb[0].mxu0
        %v3024 = vadd.f32 %v2875, %v3023
        %v3025 = vpop.f32.mrb[0].mxu0
        %v3026 = vadd.f32 %v2875, %v3025
        %3027 = vmatprep.mubr.f32.mxu0 0.0
        %3028 = vmatmul.mubr.f32.gmra.mrb[0].mxu0 %v2925
        %v3029 = vpop.f32.mrb[0].mxu0
        %v3030 = vadd.f32 %v2879, %v3029
        %v3031 = vpop.f32.mrb[0].mxu0
        %v3032 = vadd.f32 %v2879, %v3031
        %3033 = vmatprep.mubr.f32.mxu0 0.0
        %3034 = vmatmul.mubr.f32.gmra.mrb[0].mxu0 %v2928
        %v3035 = vpop.f32.mrb[0].mxu0
        %v3036 = vadd.f32 %v2883, %v3035
        %v3037 = vpop.f32.mrb[0].mxu0
        %v3038 = vadd.f32 %v2883, %v3037
        %3039 = vmatprep.mubr.f32.mxu0 0.0
        %3040 = vmatmul.mubr.f32.gmra.mrb[0].mxu0 %v2931
        %v3041 = vpop.f32.mrb[0].mxu0
        %v3042 = vadd.f32 %v2887, %v3041
        %v3043 = vpop.f32.mrb[0].mxu0
        %v3044 = vadd.f32 %v2887, %v3043
        %3045 = vmatprep.mubr.f32.mxu0 0.0
        %3046 = vmatmul.mubr.f32.gmra.mrb[0].mxu0 %v2934
        %v3047 = vpop.f32.mrb[0].mxu0
        %v3048 = vadd.f32 %v2891, %v3047
        %v3049 = vpop.f32.mrb[0].mxu0
        %v3050 = vadd.f32 %v2891, %v3049
        %3051 = vmatprep.mubr.f32.mxu0 0.0
        %3052 = vmatmul.mubr.f32.gmra.mrb[0].mxu0 %v2937
        %v3053 = vpop.f32.mrb[0].mxu0
        %v3054 = vadd.f32 %v2895, %v3053
        %v3055 = vpop.f32.mrb[0].mxu0
        %v3056 = vadd.f32 %v2895, %v3055
        %3057 = vmatprep.mubr.f32.mxu0 0.0
        %3058 = vmatmul.mubr.f32.gmra.mrb[0].mxu0 %v2940
        %v3059 = vpop.f32.mrb[0].mxu0
        %v3060 = vadd.f32 %v2899, %v3059
        %v3061 = vpop.f32.mrb[0].mxu0
        %v3062 = vadd.f32 %v2899, %v3061
        %3063 = vmatprep.mubr.f32.mxu0 0.0
        %3064 = vmatmul.mubr.f32.gmra.mrb[0].mxu0 %v2943
        %v3065 = vpop.f32.mrb[0].mxu0
        %v3066 = vadd.f32 %v2903, %v3065
        %v3067 = vpop.f32.mrb[0].mxu0
        %v3068 = vadd.f32 %v2903, %v3067
        %3069 = vmatprep.mubr.f32.mxu0 0.0
        %3070 = vmatmul.mubr.f32.gmra.mrb[0].mxu0 %v2946
        %v3071 = vpop.f32.mrb[0].mxu0
        %v3072 = vadd.f32 %v2907, %v3071
        %v3073 = vpop.f32.mrb[0].mxu0
        %v3074 = vadd.f32 %v2907, %v3073
        %3075 = vmatprep.mubr.f32.mxu0 0.0
        %3076 = vmatmul.mubr.f32.gmra.mrb[0].mxu0 %v2949
        %v3077 = vpop.f32.mrb[0].mxu0
        %v3078 = vadd.f32 %v2911, %v3077
        %v3079 = vpop.f32.mrb[0].mxu0
        %v3080 = vadd.f32 %v2911, %v3079
        %3081 = vmatprep.mubr.f32.mxu0 0.0
        %3082 = vmatmul.mubr.f32.gmra.mrb[0].mxu0 %v2952
        %v3083 = vpop.f32.mrb[0].mxu0
        %v3084 = vadd.f32 %v2915, %v3083
        %v3085 = vpop.f32.mrb[0].mxu0
        %v3086 = vadd.f32 %v2915, %v3085
        %3087 = vmatprep.mubr.f32.mxu0 0.0
        %3088 = vmatmul.mubr.f32.gmra.mrb[0].mxu0 %v2955
        %v3089 = vpop.f32.mrb[0].mxu0
        %v3090 = vadd.f32 %v2919, %v3089
        %v3091 = vpop.f32.mrb[0].mxu0
        %v3092 = vadd.f32 %v2919, %v3091
        %3093 = vdwg.mxu0
        %v3094 = vtanh.pop %v3024
        %v3095 = vtanh.pop %v3026
        %v3096 = vtanh.pop %v3030
        %v3097 = vtanh.pop %v3032
        %v3098 = vtanh.pop %v3036
        %v3099 = vtanh.pop %v3038
        %v3100 = vtanh.pop %v3042
        %v3101 = vtanh.pop %v3044
        %v3102 = vtanh.pop %v3048
        %v3103 = vtanh.pop %v3050
        %v3104 = vtanh.pop %v3054
        %v3105 = vtanh.pop %v3056
        %v3106 = vtanh.pop %v3060
        %v3107 = vtanh.pop %v3062
        %v3108 = vtanh.pop %v3066
        %v3109 = vtanh.pop %v3068
        %v3110 = vtanh.pop %v3072
        %v3111 = vtanh.pop %v3074
        %v3112 = vtanh.pop %v3078
        %v3113 = vtanh.pop %v3080
        %v3114 = vtanh.pop %v3084
        %v3115 = vtanh.pop %v3086
        %v3116 = vtanh.pop %v3090
        %v3117 = vtanh.pop %v3092
        %s3118 = scalar_lea.vmem [#allocation2], 1056
        %v3119 = vld [vmem:[%s3118] sm:$0xff]
        %v3120 = vld [vmem:[%s3118 + $0x8] sm:$0xff]
        %v3121 = vld [vmem:[%s3118 + $0x10] sm:$0xff]
        %v3122 = vld [vmem:[%s3118 + $0x18] sm:$0xff]
        %v3123 = vld [vmem:[%s3118 + $0x20] sm:$0xff]
        %v3124 = vld [vmem:[%s3118 + $0x28] sm:$0xff]
        %v3125 = vld [vmem:[%s3118 + $0x30] sm:$0xff]
        %v3126 = vld [vmem:[%s3118 + $0x38] sm:$0xff]
        %v3127 = vld [vmem:[%s3118 + $0x40] sm:$0xff]
        %v3128 = vld [vmem:[%s3118 + $0x48] sm:$0xff]
        %v3129 = vld [vmem:[%s3118 + $0x50] sm:$0xff]
        %v3130 = vld [vmem:[%s3118 + $0x58] sm:$0xff]
        %3131 = vset.pattern.permute.xlu0 11
        %3132 = vperm.xlu0 %3131, %v417
        %v3133 = vpop.permute.xlu0 %3132
        %3135 = vset.pattern.permute.xlu0 11
        %3136 = vperm.xlu0 %3135, %v418
        %v3137 = vpop.permute.xlu0 %3136
        %3138 = vset.pattern.permute.xlu0 11
        %3139 = vperm.xlu0 %3138, %v419
        %v3140 = vpop.permute.xlu0 %3139
        %3141 = vset.pattern.permute.xlu0 11
        %3142 = vperm.xlu0 %3141, %v420
        %v3143 = vpop.permute.xlu0 %3142
        %3144 = vset.pattern.permute.xlu0 11
        %3145 = vperm.xlu0 %3144, %v421
        %v3146 = vpop.permute.xlu0 %3145
        %3147 = vset.pattern.permute.xlu0 11
        %3148 = vperm.xlu0 %3147, %v422
        %v3149 = vpop.permute.xlu0 %3148
        %3150 = vset.pattern.permute.xlu0 11
        %3151 = vperm.xlu0 %3150, %v423
        %v3152 = vpop.permute.xlu0 %3151
        %3153 = vset.pattern.permute.xlu0 11
        %3154 = vperm.xlu0 %3153, %v424
        %v3155 = vpop.permute.xlu0 %3154
        %3156 = vset.pattern.permute.xlu0 11
        %3157 = vperm.xlu0 %3156, %v425
        %v3158 = vpop.permute.xlu0 %3157
        %3159 = vset.pattern.permute.xlu0 11
        %3160 = vperm.xlu0 %3159, %v426
        %v3161 = vpop.permute.xlu0 %3160
        %3162 = vset.pattern.permute.xlu0 11
        %3163 = vperm.xlu0 %3162, %v427
        %v3164 = vpop.permute.xlu0 %3163
        %3165 = vset.pattern.permute.xlu0 11
        %3166 = vperm.xlu0 %3165, %v428
        %v3167 = vpop.permute.xlu0 %3166
        %v3169 = vsel %vm598, %v3119, 0
        %v3172 = vsel %vm598, %v3120, 0
        %v3175 = vsel %vm598, %v3121, 0
        %v3178 = vsel %vm598, %v3122, 0
        %v3181 = vsel %vm598, %v3123, 0
        %v3184 = vsel %vm598, %v3124, 0
        %v3187 = vsel %vm598, %v3125, 0
        %v3190 = vsel %vm598, %v3126, 0
        %v3193 = vsel %vm598, %v3127, 0
        %v3196 = vsel %vm598, %v3128, 0
        %v3199 = vsel %vm598, %v3129, 0
        %v3202 = vsel %vm598, %v3130, 0
        %3204 = vmatprep.subr.mxu0 %v3095
        %3205 = vmatpush1.msra.mxu0 %v3094
        %3206 = vmatprep.subr.mxu0 %v3097
        %3207 = vmatpush1.msra.mxu0 %v3096
        %3208 = vmatprep.subr.mxu0 %v3099
        %3209 = vmatpush1.msra.mxu0 %v3098
        %3210 = vmatprep.subr.mxu0 %v3101
        %3211 = vmatpush1.msra.mxu0 %v3100
        %3212 = vmatprep.subr.mxu0 %v3103
        %3213 = vmatpush1.msra.mxu0 %v3102
        %3214 = vmatprep.subr.mxu0 %v3105
        %3215 = vmatpush1.msra.mxu0 %v3104
        %3216 = vmatprep.subr.mxu0 %v3107
        %3217 = vmatpush1.msra.mxu0 %v3106
        %3218 = vmatprep.subr.mxu0 %v3109
        %3219 = vmatpush1.msra.mxu0 %v3108
        %3220 = vmatprep.subr.mxu0 %v3111
        %3221 = vmatpush1.msra.mxu0 %v3110
        %3222 = vmatprep.subr.mxu0 %v3113
        %3223 = vmatpush1.msra.mxu0 %v3112
        %3224 = vmatprep.subr.mxu0 %v3115
        %3225 = vmatpush1.msra.mxu0 %v3114
        %3226 = vmatprep.subr.mxu0 %v3117
        %3227 = vmatpush1.msra.mxu0 %v3116
        %3228 = vmatprep.subr.mxu0 0.0
        %3229 = vmatpush1.msra.mxu0 0.0
        %3230 = vmatprep.subr.mxu0 0.0
        %3231 = vmatpush1.msra.mxu0 0.0
        %3232 = vmatprep.subr.mxu0 0.0
        %3233 = vmatpush1.msra.mxu0 0.0
        %3234 = vmatprep.subr.mxu0 0.0
        %3235 = vmatpush1.msra.mxu0 0.0
        %3236 = vmatprep.subr.mxu0 0.0
        %3237 = vmatpush1.msra.mxu0 0.0
        %3238 = vmatprep.subr.mxu0 0.0
        %3239 = vmatpush1.msra.mxu0 0.0
        %3240 = vmatprep.subr.mxu0 0.0
        %3241 = vmatpush1.msra.mxu0 0.0
        %3242 = vmatprep.subr.mxu0 0.0
        %3243 = vmatpush1.msra.mxu0 0.0
        %3244 = vmatprep.subr.mxu0 0.0
        %3245 = vmatpush1.msra.mxu0 0.0
        %3246 = vmatprep.subr.mxu0 0.0
        %3247 = vmatpush1.msra.mxu0 0.0
        %3248 = vmatprep.subr.mxu0 0.0
        %3249 = vmatpush1.msra.mxu0 0.0
        %3250 = vmatprep.subr.mxu0 0.0
        %3251 = vmatpush1.msra.mxu0 0.0
        %3252 = vmatprep.subr.mxu0 0.0
        %3253 = vmatpush1.msra.mxu0 0.0
        %3254 = vmatprep.subr.mxu0 0.0
        %3255 = vmatpush1.msra.mxu0 0.0
        %3256 = vmatprep.subr.mxu0 0.0
        %3257 = vmatpush1.msra.mxu0 0.0
        %3258 = vmatprep.subr.mxu0 0.0
        %3259 = vmatpush1.msra.mxu0 0.0
        %3260 = vmatprep.subr.mxu0 0.0
        %3261 = vmatpush1.msra.mxu0 0.0
        %3262 = vmatprep.subr.mxu0 0.0
        %3263 = vmatpush1.msra.mxu0 0.0
        %3264 = vmatprep.subr.mxu0 0.0
        %3265 = vmatpush1.msra.mxu0 0.0
        %3266 = vmatprep.subr.mxu0 0.0
        %3267 = vmatpush1.msra.mxu0 0.0
        %3268 = vmatprep.mubr.f32.mxu0 0.0
        %3269 = vmatmul.mubr.f32.gmra.mrb[0].mxu0 %v3169
        %v3270 = vpop.f32.mrb[0].mxu0
        %v3271 = vadd.f32 %v3133, %v3270
        %v3272 = vpop.f32.mrb[0].mxu0
        %v3273 = vadd.f32 %v3133, %v3272
        %3274 = vmatprep.mubr.f32.mxu0 0.0
        %3275 = vmatmul.mubr.f32.gmra.mrb[0].mxu0 %v3172
        %v3276 = vpop.f32.mrb[0].mxu0
        %v3277 = vpop.f32.mrb[0].mxu0
        %3278 = vmatprep.mubr.f32.mxu0 0.0
        %3279 = vmatmul.mubr.f32.gmra.mrb[0].mxu0 %v3175
        %v3280 = vpop.f32.mrb[0].mxu0
        %v3281 = vpop.f32.mrb[0].mxu0
        %3282 = vmatprep.mubr.f32.mxu0 0.0
        %3283 = vmatmul.mubr.f32.gmra.mrb[0].mxu0 %v3178
        %v3284 = vpop.f32.mrb[0].mxu0
        %v3285 = vpop.f32.mrb[0].mxu0
        %3286 = vmatprep.mubr.f32.mxu0 0.0
        %3287 = vmatmul.mubr.f32.gmra.mrb[0].mxu0 %v3181
        %v3288 = vpop.f32.mrb[0].mxu0
        %v3289 = vpop.f32.mrb[0].mxu0
        %3290 = vmatprep.mubr.f32.mxu0 0.0
        %3291 = vmatmul.mubr.f32.gmra.mrb[0].mxu0 %v3184
        %v3292 = vpop.f32.mrb[0].mxu0
        %v3293 = vpop.f32.mrb[0].mxu0
        %3294 = vmatprep.mubr.f32.mxu0 0.0
        %3295 = vmatmul.mubr.f32.gmra.mrb[0].mxu0 %v3187
        %v3296 = vpop.f32.mrb[0].mxu0
        %v3297 = vpop.f32.mrb[0].mxu0
        %3298 = vmatprep.mubr.f32.mxu0 0.0
        %3299 = vmatmul.mubr.f32.gmra.mrb[0].mxu0 %v3190
        %v3300 = vpop.f32.mrb[0].mxu0
        %v3301 = vpop.f32.mrb[0].mxu0
        %3302 = vmatprep.mubr.f32.mxu0 0.0
        %3303 = vmatmul.mubr.f32.gmra.mrb[0].mxu0 %v3193
        %v3304 = vpop.f32.mrb[0].mxu0
        %v3305 = vpop.f32.mrb[0].mxu0
        %3306 = vmatprep.mubr.f32.mxu0 0.0
        %3307 = vmatmul.mubr.f32.gmra.mrb[0].mxu0 %v3196
        %v3308 = vpop.f32.mrb[0].mxu0
        %v3309 = vpop.f32.mrb[0].mxu0
        %3310 = vmatprep.mubr.f32.mxu0 0.0
        %3311 = vmatmul.mubr.f32.gmra.mrb[0].mxu0 %v3199
        %v3312 = vpop.f32.mrb[0].mxu0
        %v3313 = vpop.f32.mrb[0].mxu0
        %3314 = vmatprep.mubr.f32.mxu0 0.0
        %3315 = vmatmul.mubr.f32.gmra.mrb[0].mxu0 %v3202
        %v3316 = vpop.f32.mrb[0].mxu0
        %v3317 = vpop.f32.mrb[0].mxu0
        %3318 = vdwg.mxu0
        %v3321 = vcombine.low %v3271, %v3273
        %v3323 = vunpack.c.l.s4 1966171168
        %v3324 = vunpack.c.0.s8 %v3323
        %v3325 = vlaneseq
        %v3326 = vshrl.u32 %v3325, 7
        %v3327 = vsub.s32 %v3324, %v3326
        %v3328 = vrot.slane %v3321, %v3327
        %v3330 = vunpack.c.l.s4 1966171168
        %v3331 = vunpack.c.0.s8 %v3330
        %v3332 = vlaneseq
        %v3333 = vshrl.u32 %v3332, 7
        %v3334 = vsub.s32 %v3331, %v3333
        %v3335 = vrot.slane %v3328, %v3334
        %v3337 = vlaneseq
        %vm3338 = vcmp.ge.s32.totalorder %v3337, 0
        %vm3339 = vcmp.lt.s32.totalorder %v3337, 256
        %vm3340 = vmand %vm3338, %vm3339
        %3341 = vst.msk [vmem:[%s179] sm:$0x3] %vm3340, %v3335
        %s3342 = sand.u32 %s94, 1
        %s3343 = scalar_lea.sflag [#allocation4], %s3342
        %s3344 = sand.u32 %s94, 1
        %s3345 = smul.addr %s3344, 2
        %s3346 = scalar_lea.vmem [#allocation5], %s3345
        // Predicated region
        $region37: #{gpnet2_1_4_forward.1} parent=31 // pred_check
          %p3347 = pneg %p104
        $region38: #{gpnet2_1_4_forward.1} parent=31 // pred_check_branch
          %3349 = sbr.rel (%p3347) target = $region40
        $region39: #{gpnet2_1_4_forward.1} parent=31 // pred_region
          %s3350 = smul.u32 2, %s18
          %s3352 = ssub.s32 32, 32
          %3353 = vsyncadd %s3343, %s3352
          %s3354 = smul.addr %s3350, 16
          %s3355 = scalar_lea.hbm %s3, %s3354
          %s3357 = sshll.u32 %s3346, 4
          %s3358 = int_to_ptr.vmem [resolvable:$true] %s3357
          %3360 = dma.vmem_to_hbm [thread:$0]  %s3358, 32, %s3355, %s3343
        $region40: #{gpnet2_1_4_forward.1} parent=31 // pred_fallthru
          _
      $region32: #{gpnet2_1_4_forward.1} parent=5 // pred_fallthru
        _
      %p3361 = scmp.le.s32.totalorder 2, %s13
      // Predicated region
      $region41: #{gpnet2_1_4_forward.1} parent=5 // pred_check
        %p3362 = pneg %p3361
      $region42: #{gpnet2_1_4_forward.1} parent=5 // pred_check_branch
        %3364 = sbr.rel (%p3362) target = $region44
      $region43: #{gpnet2_1_4_forward.1} parent=5 // pred_region
        %s3365 = ssub.s32 %s13, 2
        // Predicated region
        $region45: #{gpnet2_1_4_forward.1} parent=43 // pred_check
          %p3366 = pneg %p110
        $region46: #{gpnet2_1_4_forward.1} parent=43 // pred_check_branch
          %3368 = sbr.rel (%p3366) target = $region48
        $region47: #{gpnet2_1_4_forward.1} parent=43 // pred_region
          %s3369 = sand.u32 %s95, 1
          %s3370 = scalar_lea.sflag [#allocation4], %s3369
          %s3371 = sand.u32 %s95, 1
          %s3372 = smul.addr %s3371, 2
          %s3373 = scalar_lea.vmem [#allocation5], %s3372
          %3374 = dma.done %s3370, 32
        $region48: #{gpnet2_1_4_forward.1} parent=43 // pred_fallthru
          _
      $region44: #{gpnet2_1_4_forward.1} parent=5 // pred_fallthru
        _
    $region6: #{gpnet2_1_4_forward.1} parent=1 // loop_footer
      %s17 = sadd.s32 1, %s13
    $region7: #{gpnet2_1_4_forward.1} parent=1 // loop_footer_branch
      %12 = sbr.rel target = $region3
    $region8: #{gpnet2_1_4_forward.1} parent=1 // loop_exit
      _
    %3375 = vsyncpa [#allocation3], 1
    %s3376 = scalar_lea.sflag [#allocation3], 1
    %3377 = vsyncpa %s3376, 1
    %3378 = vsyncpa [#allocation4], 1
    %s3379 = scalar_lea.sflag [#allocation4], 1
    %3380 = vsyncpa %s3379, 1

</llo_original>
